<compile_context>
chip_gen: v6e
topology: v6e:2x2x1
jax: 0.10.0
libtpu: 0.0.40
codegen_flags: <defaults>
</compile_context>

<pallas_src>
import functools

import jax
import jax.numpy as jnp
from jax.experimental import pallas as pl
from jax.experimental.pallas import tpu as pltpu


HIDDEN = 512      # conv1 output channels (fixed by the module)
_W2_ROWS = 8      # conv2 weight row zero-padded to a full sublane tile


def _round_up(a, m):
    return (a + m - 1) // m * m


def _attention2d_kernel(x_ref, w1_ref, b1_ref, w2_ref, b2_ref, o_ref,
                        *, leaky_slope):
    # x_ref : (1, C, tn)      one batch, all channels, tn pixels on lanes
    # w1_ref: (HIDDEN, C)     conv1 weight (1x1 conv == dense over channels)
    # b1_ref: (HIDDEN, 1)     conv1 bias (broadcast along lanes)
    # w2_ref: (8, HIDDEN)     conv2 weight in row 0, rows 1..7 zero
    # b2_ref: (1, 1)          conv2 bias (SMEM scalar)
    # o_ref : (1, 1, tn)      output attention row (lane-dense store)
    x = x_ref[0]                                                  # (C, tn)

    # conv1: h[j, p] = sum_c W1[j, c] * x[c, p] + b1[j]
    h = jnp.dot(w1_ref[...], x, preferred_element_type=jnp.float32)
    h = h + b1_ref[...]                                           # f32
    if leaky_slope is None:
        h = jnp.maximum(h, 0.0)                                   # ReLU
    else:
        h = jnp.where(h > 0.0, h, leaky_slope * h)                # LeakyReLU

    # conv2: y[p] = sum_j w2[j] * h[j, p] + b2   (K=512 fully used on the MXU)
    y8 = jnp.dot(w2_ref[...], h.astype(w2_ref.dtype),
                 preferred_element_type=jnp.float32)              # (8, tn)
    y = y8[0:1, :] + b2_ref[0, 0]                                 # (1, tn)

    # Softplus(beta=1, threshold=20): log1p(exp(y)) for y <= 20, identity above.
    y_c = jnp.minimum(y, 20.0)
    sp = jnp.where(y > 20.0, y, jnp.log1p(jnp.exp(y_c)))
    o_ref[0] = sp.astype(o_ref.dtype)


def attention2d_forward(x_nchw, w1, b1, w2, b2, *, tile_pixels=1024,
                        compute_dtype=jnp.float32, act_fn="relu"):
    """x_nchw: (B, C, H, W).  w1: (512, C), b1: (512,), w2: (1, 512), b2: (1,).

    Returns (B, 1, H, W) float32 (matches the PyTorch module's output).
    """
    B, C, H, W = x_nchw.shape
    HW = H * W

    # Pixel tile: multiple of 128 lanes; cap so scratch/VMEM stays comfortable.
    tile_pixels = min(max(128, _round_up(tile_pixels, 128)), 4096)
    tn = _round_up(HW, 128) if HW <= tile_pixels else tile_pixels
    hw_pad = _round_up(HW, tn)

    # NCHW already has pixels contiguous per channel -> this reshape is free.
    x_flat = x_nchw.reshape(B, C, HW)
    if hw_pad != HW:
        x_flat = jnp.pad(x_flat, ((0, 0), (0, 0), (0, hw_pad - HW)))
    x_flat = x_flat.astype(compute_dtype)

    w1_m = w1.reshape(HIDDEN, C).astype(compute_dtype)            # (512, C)
    b1_m = b1.reshape(HIDDEN, 1).astype(jnp.float32)              # (512, 1)
    w2_row = w2.reshape(1, HIDDEN).astype(compute_dtype)          # lane-dense
    w2_m = jnp.zeros((_W2_ROWS, HIDDEN), compute_dtype).at[0].set(w2_row[0])
    b2_m = b2.reshape(1, 1).astype(jnp.float32)                   # SMEM scalar

    leaky_slope = 0.01 if act_fn.lower() == "leakyrelu" else None
    kernel = functools.partial(_attention2d_kernel, leaky_slope=leaky_slope)

    grid = (B, hw_pad // tn)

    out = pl.pallas_call(
        kernel,
        out_shape=jax.ShapeDtypeStruct((B, 1, hw_pad), jnp.float32),
        grid=grid,
        in_specs=[
            pl.BlockSpec((1, C, tn), lambda b, j: (b, 0, j)),          # x tile
            pl.BlockSpec((HIDDEN, C), lambda b, j: (0, 0)),            # W1
            pl.BlockSpec((HIDDEN, 1), lambda b, j: (0, 0)),            # b1
            pl.BlockSpec((_W2_ROWS, HIDDEN), lambda b, j: (0, 0)),     # W2 (padded)
            pl.BlockSpec(memory_space=pltpu.MemorySpace.SMEM),         # b2 scalar
        ],
        out_specs=pl.BlockSpec((1, 1, tn), lambda b, j: (b, 0, j)),
        compiler_params=pltpu.CompilerParams(
            dimension_semantics=("parallel", "parallel")),
    )(x_flat, w1_m, b1_m, w2_m, b2_m)

    # Drop spatial padding and restore NCHW (both reshapes/slices are cheap).
    return out[:, :, :HW].reshape(B, 1, H, W)


def init_params(key, in_c):
    """Deterministic init matching the module's (squeezed) parameter shapes.

    conv1: weight (512, in_c, 1, 1) -> (512, in_c);  bias (512,)
    conv2: weight (1, 512, 1, 1)    -> (1, 512);     bias (1,)
    """
    k1, k2, k3, k4 = jax.random.split(key, 4)
    bound1 = 1.0 / (in_c ** 0.5)
    bound2 = 1.0 / (HIDDEN ** 0.5)
    w1 = jax.random.uniform(k1, (HIDDEN, in_c), jnp.float32, -bound1, bound1)
    b1 = jax.random.uniform(k2, (HIDDEN,), jnp.float32, -bound1, bound1)
    w2 = jax.random.uniform(k3, (1, HIDDEN), jnp.float32, -bound2, bound2)
    b2 = jax.random.uniform(k4, (1,), jnp.float32, -bound2, bound2)
    return w1, b1, w2, b2


if __name__ == "__main__":
    key = jax.random.PRNGKey(0)
    kx, kp = jax.random.split(key)

    B, C, H, W = 2, 4, 16, 16
    x = jax.random.normal(kx, (B, C, H, W), jnp.float32)
    w1, b1, w2, b2 = init_params(kp, C)

    out = attention2d_forward(x, w1, b1, w2, b2)
    out = jax.block_until_ready(out)

    # Pure-JAX reference (same math, no Pallas).
    x_rows = jnp.transpose(x, (0, 2, 3, 1)).reshape(-1, C)        # (B*H*W, C)
    h = jnp.maximum(x_rows @ w1.T + b1[None, :], 0.0)
    y = h @ w2.T + b2[None, :]
    ref = jnp.where(y > 20.0, y, jnp.log1p(jnp.exp(jnp.minimum(y, 20.0))))
    ref = jnp.transpose(ref.reshape(B, H, W, 1), (0, 3, 1, 2))

    assert out.shape == (B, 1, H, W), out.shape
    assert jnp.allclose(out, ref, atol=1e-4, rtol=1e-4), "mismatch vs reference"

    print("KERNEL_OK")
</pallas_src>

<mosaic_0001>
module attributes {stable_mosaic.version = 11 : i64} {
  func.func @_attention2d_kernel(%arg0: i32, %arg1: i32, %arg2: memref<1x4x256xf32, #tpu.memory_space<vmem>>, %arg3: memref<512x4xf32, #tpu.memory_space<vmem>>, %arg4: memref<512x1xf32, #tpu.memory_space<vmem>>, %arg5: memref<8x512xf32, #tpu.memory_space<vmem>>, %arg6: memref<1x1xf32, #tpu.memory_space<smem>>, %arg7: memref<1x1x256xf32, #tpu.memory_space<vmem>>) attributes {dimension_semantics = [#tpu.dimension_semantics<parallel>, #tpu.dimension_semantics<parallel>], iteration_bounds = array<i64: 2, 1>, scalar_prefetch = 0 : i64, scratch_operands = 0 : i64, tpu.core_type = #tpu.core_type<tc>, window_params = [{transform_indices = @transform_0, window_bounds = array<i64: 1, 4, 256>}, {pipeline_mode = #tpu.pipeline_mode<synchronous>, transform_indices = @transform_1, window_bounds = array<i64: 512, 4>}, {pipeline_mode = #tpu.pipeline_mode<synchronous>, transform_indices = @transform_2, window_bounds = array<i64: 512, 1>}, {pipeline_mode = #tpu.pipeline_mode<synchronous>, transform_indices = @transform_3, window_bounds = array<i64: 8, 512>}, {transform_indices = @transform_4, window_bounds = array<i64: 1, 1>}, {transform_indices = @transform_5, window_bounds = array<i64: 1, 1, 256>}]} {
    %c0 = arith.constant 0 : index
    %c0_0 = arith.constant 0 : index
    %c0_1 = arith.constant 0 : index
    %0 = vector.load %arg2[%c0, %c0_0, %c0_1] : memref<1x4x256xf32, #tpu.memory_space<vmem>>, vector<1x4x256xf32>
    %1 = vector.shape_cast %0 : vector<1x4x256xf32> to vector<4x256xf32>
    %c0_2 = arith.constant 0 : index
    %c0_3 = arith.constant 0 : index
    %2 = vector.load %arg3[%c0_2, %c0_3] : memref<512x4xf32, #tpu.memory_space<vmem>>, vector<512x4xf32>
    %cst = arith.constant dense<0.000000e+00> : vector<512x256xf32>
    %3 = tpu.matmul %2, %1, %cst {dimension_numbers = #tpu.dot_dimension_numbers<[1], [0], [0], [1], [0, 0, 1, 1], [], []>} : vector<512x4xf32>, vector<4x256xf32>, vector<512x256xf32> -> vector<512x256xf32>
    %c0_4 = arith.constant 0 : index
    %c0_5 = arith.constant 0 : index
    %4 = vector.load %arg4[%c0_4, %c0_5] : memref<512x1xf32, #tpu.memory_space<vmem>>, vector<512x1xf32>
    %5 = vector.broadcast %4 : vector<512x1xf32> to vector<512x256xf32>
    %6 = arith.addf %3, %5 : vector<512x256xf32>
    %cst_6 = arith.constant 0.000000e+00 : f32
    %7 = vector.broadcast %cst_6 : f32 to vector<512x256xf32>
    %8 = arith.maximumf %6, %7 : vector<512x256xf32>
    %c0_7 = arith.constant 0 : index
    %c0_8 = arith.constant 0 : index
    %9 = vector.load %arg5[%c0_7, %c0_8] : memref<8x512xf32, #tpu.memory_space<vmem>>, vector<8x512xf32>
    %cst_9 = arith.constant dense<0.000000e+00> : vector<8x256xf32>
    %10 = tpu.matmul %9, %8, %cst_9 {dimension_numbers = #tpu.dot_dimension_numbers<[1], [0], [0], [1], [0, 0, 1, 1], [], []>} : vector<8x512xf32>, vector<512x256xf32>, vector<8x256xf32> -> vector<8x256xf32>
    %11 = vector.extract_strided_slice %10 {offsets = [0, 0], sizes = [1, 256], strides = [1, 1]} : vector<8x256xf32> to vector<1x256xf32>
    %c0_10 = arith.constant 0 : index
    %c0_11 = arith.constant 0 : index
    %12 = memref.load %arg6[%c0_10, %c0_11] : memref<1x1xf32, #tpu.memory_space<smem>>
    %13 = vector.broadcast %12 : f32 to vector<1x256xf32>
    %14 = arith.addf %11, %13 : vector<1x256xf32>
    %cst_12 = arith.constant 2.000000e+01 : f32
    %15 = vector.broadcast %cst_12 : f32 to vector<1x256xf32>
    %16 = arith.minimumf %14, %15 : vector<1x256xf32>
    %cst_13 = arith.constant 2.000000e+01 : f32
    %17 = vector.broadcast %cst_13 : f32 to vector<1x256xf32>
    %18 = arith.cmpf ogt, %14, %17 : vector<1x256xf32>
    %19 = math.exp %16 : vector<1x256xf32>
    %20 = math.log1p %19 : vector<1x256xf32>
    %21 = arith.select %18, %14, %20 : vector<1x256xi1>, vector<1x256xf32>
    %c0_14 = arith.constant 0 : index
    %c0_15 = arith.constant 0 : index
    %c0_16 = arith.constant 0 : index
    %22 = vector.load %arg7[%c0_14, %c0_15, %c0_16] : memref<1x1x256xf32, #tpu.memory_space<vmem>>, vector<1x1x256xf32>
    %23 = vector.shape_cast %22 : vector<1x1x256xf32> to vector<1x256xf32>
    %24 = vector.shape_cast %21 : vector<1x256xf32> to vector<1x1x256xf32>
    tpu.vector_store %arg7[%c0_14, %c0_15, %c0_16], %24 {strides = array<i32>} : memref<1x1x256xf32, #tpu.memory_space<vmem>>, vector<1x1x256xf32>,
    return
  }
  func.func @transform_0(%arg0: i32, %arg1: i32) -> (i32, i32, i32) {
    %c0_i32 = arith.constant 0 : i32
    %c0_i32_0 = arith.constant 0 : i32
    return %arg0, %c0_i32, %arg1 : i32, i32, i32
  }
  func.func @transform_1(%arg0: i32, %arg1: i32) -> (i32, i32) {
    %c0_i32 = arith.constant 0 : i32
    %c0_i32_0 = arith.constant 0 : i32
    %c0_i32_1 = arith.constant 0 : i32
    return %c0_i32, %c0_i32_0 : i32, i32
  }
  func.func @transform_2(%arg0: i32, %arg1: i32) -> (i32, i32) {
    %c0_i32 = arith.constant 0 : i32
    %c0_i32_0 = arith.constant 0 : i32
    %c0_i32_1 = arith.constant 0 : i32
    return %c0_i32, %c0_i32_0 : i32, i32
  }
  func.func @transform_3(%arg0: i32, %arg1: i32) -> (i32, i32) {
    %c0_i32 = arith.constant 0 : i32
    %c0_i32_0 = arith.constant 0 : i32
    %c0_i32_1 = arith.constant 0 : i32
    return %c0_i32, %c0_i32_0 : i32, i32
  }
  func.func @transform_4(%arg0: i32, %arg1: i32) -> (i32, i32) {
    %c0_i32 = arith.constant 0 : i32
    %c0_i32_0 = arith.constant 0 : i32
    %c0_i32_1 = arith.constant 0 : i32
    return %c0_i32, %c0_i32_0 : i32, i32
  }
  func.func @transform_5(%arg0: i32, %arg1: i32) -> (i32, i32, i32) {
    %c0_i32 = arith.constant 0 : i32
    %c0_i32_0 = arith.constant 0 : i32
    return %arg0, %c0_i32, %arg1 : i32, i32, i32
  }
}

</mosaic_0001>

<llo_original>
// kernel: tpu_custom_call.1
$region0: #{tpu_custom_call.1}
  #allocation0 [shape = 'u32[]', space=smem, size = 0x4, offset = 0x4, fixed_abs, tag = 'smem constant byte address 0x4 - core index']
  #allocation1 [shape = 'u32[144,128]{1,0:T(1,128)}', space=vmem, size = 0x12000, scoped, tag = 'internal scratch']
  #allocation2 [shape = 'f32[1,1]{1,0:T(1,128)S(6)}', space=smem, size = 0x200, scoped, tag = 'scoped memory for tpu_custom_call.1']
  %s0 = inlined_call_operand.vmem [shape: f32[2,4,256], index: 0, kind: input, shape index: {}]
  %s1 = inlined_call_operand.vmem [shape: f32[512,4], index: 1, kind: input, shape index: {}]
  %s2 = inlined_call_operand.vmem [shape: f32[512,1], index: 2, kind: input, shape index: {}]
  %s3 = inlined_call_operand.vmem [shape: f32[8,512], index: 3, kind: input, shape index: {}]
  %s4 = inlined_call_operand.<no memory space> [shape: f32[1,1], index: 4, kind: input, shape index: {}]
  %s5 = inlined_call_operand.hbm [shape: f32[2,1,256], index: 5, kind: output, shape index: {}]
  %s6 = sld [smem:[#allocation0]]
  $region53: #{tpu_custom_call.1} parent=0
    _
  %s8 = ssub.s32 1, %s6
  %s9 = scalar_select 0, %s8, %s6
  %10 = sst [smem:[#allocation2]] %s4
  $region1: #{tpu_custom_call.1} parent=0
    #allocation3 [shape = 'u8[2048]{0}', space=vmem, size = 0x800, scoped, tag = 'output window, operand 0']
    #allocation4 [shape = 's32[2]{0}', space=sflag, size = 0x8, scoped, tag = 'scoped memory for tpu_custom_call.1']
    %11 = vsyncpa [#allocation4], 0
    %s12 = scalar_lea.sflag [#allocation4], 1
    %13 = vsyncpa %s12, 0
    loop: start=0, step=1, limit=4
    $region2: #{tpu_custom_call.1} parent=1 // loop_pre_header
      _
    $region3: #{tpu_custom_call.1} parent=1 // loop_header
      %s15 = sphi 0, %s19
      %p16 = scmp.ge.s32.totalorder %s15, 4
      %s22 = sphi 0, %s34
      %s23 = sphi 0, %s30
      %s24 = sphi 0, %s22
      %s25 = sphi 0, %s23
      %s26 = sphi 0, %s24
      %s27 = sphi 0, %s25
      %s39 = sphi 0, %s41
      %s42 = sphi 0, %s39
      %s43 = sphi 0, %s42
      %s59 = sphi 0, %s43
      %s63 = sphi 0, %s63
      %s65 = sphi 0, %s63
      %s66 = sphi 0, %s65
      %s80 = sphi 0, %s66
      %s84 = sphi 0, %s84
      %s86 = sphi 0, %s84
      %s87 = sphi 0, %s86
      %s101 = sphi 0, %s87
      %s105 = sphi 0, %s105
      %s107 = sphi 0, %s105
      %s108 = sphi 0, %s107
      %s122 = sphi 0, %s108
      %s126 = sphi 0, %s126
      %s128 = sphi 0, %s126
      %s129 = sphi 0, %s128
      %s143 = sphi 0, %s129
      %s151 = sphi 0, %s153
      %s154 = sphi 0, %s151
      %s155 = sphi 0, %s154
      %s171 = sphi 0, %s155
    $region4: #{tpu_custom_call.1} parent=1 // loop_header_branch
      %18 = sbr.rel (%p16) target = $region8
    $region5: #{tpu_custom_call.1} parent=1 // loop_body
      %s20 = ssub.s32 %s15, 1
      %s21 = ssub.s32 %s15, 2
      %s28 = sadd.s32 1, %s23
      %p29 = scmp.ge.s32.totalorder %s28, 1
      %s30 = scalar_select %p29, 0, %s28
      %s31 = sadd.s32 1, %s22
      %s32 = scalar_select %p29, %s31, %s22
      %p33 = scmp.ge.s32.totalorder %s32, 2
      %s34 = scalar_select %p33, 0, %s32
      %s35 = ssub.s32 %s22, %s34
      %s36 = ssub.s32 %s23, %s30
      %s37 = sor.u32 %s35, %s36
      %p38 = scmp.eq.s32.totalorder %s37, 0
      %s40 = sadd.s32 %s39, 1
      %s41 = scalar_select %p38, %s39, %s40
      %p44 = pneg %p38
      %p45 = scmp.eq.s32.totalorder %s15, 1
      %p46 = por %p44, %p45
      %p47 = scmp.ne.s32.totalorder %s39, %s42
      %p48 = scmp.eq.s32.totalorder %s15, 0
      %p49 = por %p47, %p48
      %p50 = scmp.ne.s32.totalorder %s39, %s42
      %p51 = scmp.eq.s32.totalorder %s20, 1
      %p52 = por %p50, %p51
      %p53 = scmp.ne.s32.totalorder %s42, %s43
      %p54 = scmp.eq.s32.totalorder %s20, 0
      %p55 = por %p53, %p54
      %p56 = scmp.ne.s32.totalorder %s42, %s43
      %p57 = scmp.eq.s32.totalorder %s21, 1
      %p58 = por %p56, %p57
      %p60 = scmp.ne.s32.totalorder %s43, %s59
      %p61 = scmp.eq.s32.totalorder %s21, 0
      %p62 = por %p60, %p61
      %s64 = sadd.s32 %s63, 1
      %p67 = scmp.eq.s32.totalorder %s15, 1
      %p68 = scmp.ne.s32.totalorder %s63, %s65
      %p69 = scmp.eq.s32.totalorder %s15, 0
      %p70 = por %p68, %p69
      %p71 = scmp.ne.s32.totalorder %s63, %s65
      %p72 = scmp.eq.s32.totalorder %s20, 1
      %p73 = por %p71, %p72
      %p74 = scmp.ne.s32.totalorder %s65, %s66
      %p75 = scmp.eq.s32.totalorder %s20, 0
      %p76 = por %p74, %p75
      %p77 = scmp.ne.s32.totalorder %s65, %s66
      %p78 = scmp.eq.s32.totalorder %s21, 1
      %p79 = por %p77, %p78
      %p81 = scmp.ne.s32.totalorder %s66, %s80
      %p82 = scmp.eq.s32.totalorder %s21, 0
      %p83 = por %p81, %p82
      %s85 = sadd.s32 %s84, 1
      %p88 = scmp.eq.s32.totalorder %s15, 1
      %p89 = scmp.ne.s32.totalorder %s84, %s86
      %p90 = scmp.eq.s32.totalorder %s15, 0
      %p91 = por %p89, %p90
      %p92 = scmp.ne.s32.totalorder %s84, %s86
      %p93 = scmp.eq.s32.totalorder %s20, 1
      %p94 = por %p92, %p93
      %p95 = scmp.ne.s32.totalorder %s86, %s87
      %p96 = scmp.eq.s32.totalorder %s20, 0
      %p97 = por %p95, %p96
      %p98 = scmp.ne.s32.totalorder %s86, %s87
      %p99 = scmp.eq.s32.totalorder %s21, 1
      %p100 = por %p98, %p99
      %p102 = scmp.ne.s32.totalorder %s87, %s101
      %p103 = scmp.eq.s32.totalorder %s21, 0
      %p104 = por %p102, %p103
      %s106 = sadd.s32 %s105, 1
      %p109 = scmp.eq.s32.totalorder %s15, 1
      %p110 = scmp.ne.s32.totalorder %s105, %s107
      %p111 = scmp.eq.s32.totalorder %s15, 0
      %p112 = por %p110, %p111
      %p113 = scmp.ne.s32.totalorder %s105, %s107
      %p114 = scmp.eq.s32.totalorder %s20, 1
      %p115 = por %p113, %p114
      %p116 = scmp.ne.s32.totalorder %s107, %s108
      %p117 = scmp.eq.s32.totalorder %s20, 0
      %p118 = por %p116, %p117
      %p119 = scmp.ne.s32.totalorder %s107, %s108
      %p120 = scmp.eq.s32.totalorder %s21, 1
      %p121 = por %p119, %p120
      %p123 = scmp.ne.s32.totalorder %s108, %s122
      %p124 = scmp.eq.s32.totalorder %s21, 0
      %p125 = por %p123, %p124
      %s127 = sadd.s32 %s126, 1
      %p130 = scmp.eq.s32.totalorder %s15, 1
      %p131 = scmp.ne.s32.totalorder %s126, %s128
      %p132 = scmp.eq.s32.totalorder %s15, 0
      %p133 = por %p131, %p132
      %p134 = scmp.ne.s32.totalorder %s126, %s128
      %p135 = scmp.eq.s32.totalorder %s20, 1
      %p136 = por %p134, %p135
      %p137 = scmp.ne.s32.totalorder %s128, %s129
      %p138 = scmp.eq.s32.totalorder %s20, 0
      %p139 = por %p137, %p138
      %p140 = scmp.ne.s32.totalorder %s128, %s129
      %p141 = scmp.eq.s32.totalorder %s21, 1
      %p142 = por %p140, %p141
      %p144 = scmp.ne.s32.totalorder %s129, %s143
      %p145 = scmp.eq.s32.totalorder %s21, 0
      %p146 = por %p144, %p145
      %s147 = ssub.s32 %s22, %s34
      %s148 = ssub.s32 %s23, %s30
      %s149 = sor.u32 %s147, %s148
      %p150 = scmp.eq.s32.totalorder %s149, 0
      %s152 = sadd.s32 %s151, 1
      %s153 = scalar_select %p150, %s151, %s152
      %p156 = pneg %p150
      %p157 = scmp.eq.s32.totalorder %s15, 1
      %p158 = por %p156, %p157
      %p159 = scmp.ne.s32.totalorder %s151, %s154
      %p160 = scmp.eq.s32.totalorder %s15, 0
      %p161 = por %p159, %p160
      %p162 = scmp.ne.s32.totalorder %s151, %s154
      %p163 = scmp.eq.s32.totalorder %s20, 1
      %p164 = por %p162, %p163
      %p165 = scmp.ne.s32.totalorder %s154, %s155
      %p166 = scmp.eq.s32.totalorder %s20, 0
      %p167 = por %p165, %p166
      %p168 = scmp.ne.s32.totalorder %s154, %s155
      %p169 = scmp.eq.s32.totalorder %s21, 1
      %p170 = por %p168, %p169
      %p172 = scmp.ne.s32.totalorder %s155, %s171
      %p173 = scmp.eq.s32.totalorder %s21, 0
      %p174 = por %p172, %p173
      %p175 = scmp.le.s32.totalorder 1, %s15
      %p176 = scmp.lt.s32.totalorder %s15, 3
      %p177 = pnand %p175, %p176
      %p178 = pneg %p177
      // Predicated region
      $region9: #{tpu_custom_call.1} parent=5 // pred_check
        _
      $region10: #{tpu_custom_call.1} parent=5 // pred_check_branch
        %180 = sbr.rel (%p177) target = $region12
      $region11: #{tpu_custom_call.1} parent=5 // pred_region
        %s181 = ssub.s32 %s15, 1
        // Predicated region
        $region13: #{tpu_custom_call.1} parent=11 // pred_check
          %p182 = pneg %p76
        $region14: #{tpu_custom_call.1} parent=11 // pred_check_branch
          %184 = sbr.rel (%p182) target = $region16
        $region15: #{tpu_custom_call.1} parent=11 // pred_region
          _
        $region16: #{tpu_custom_call.1} parent=11 // pred_fallthru
          _
        // Predicated region
        $region17: #{tpu_custom_call.1} parent=11 // pred_check
          %p185 = pneg %p97
        $region18: #{tpu_custom_call.1} parent=11 // pred_check_branch
          %187 = sbr.rel (%p185) target = $region20
        $region19: #{tpu_custom_call.1} parent=11 // pred_region
          _
        $region20: #{tpu_custom_call.1} parent=11 // pred_fallthru
          _
        // Predicated region
        $region21: #{tpu_custom_call.1} parent=11 // pred_check
          %p188 = pneg %p118
        $region22: #{tpu_custom_call.1} parent=11 // pred_check_branch
          %190 = sbr.rel (%p188) target = $region24
        $region23: #{tpu_custom_call.1} parent=11 // pred_region
          _
        $region24: #{tpu_custom_call.1} parent=11 // pred_fallthru
          _
        // Predicated region
        $region25: #{tpu_custom_call.1} parent=11 // pred_check
          %p191 = pneg %p139
        $region26: #{tpu_custom_call.1} parent=11 // pred_check_branch
          %193 = sbr.rel (%p191) target = $region28
        $region27: #{tpu_custom_call.1} parent=11 // pred_region
          _
        $region28: #{tpu_custom_call.1} parent=11 // pred_fallthru
          _
      $region12: #{tpu_custom_call.1} parent=5 // pred_fallthru
        _
      %p194 = scmp.lt.s32.totalorder %s15, 2
      // Predicated region
      $region29: #{tpu_custom_call.1} parent=5 // pred_check
        %p195 = pneg %p194
      $region30: #{tpu_custom_call.1} parent=5 // pred_check_branch
        %197 = sbr.rel (%p195) target = $region32
      $region31: #{tpu_custom_call.1} parent=5 // pred_region
        // Predicated region
        $region33: #{tpu_custom_call.1} parent=31 // pred_check
          %p198 = pneg %p49
        $region34: #{tpu_custom_call.1} parent=31 // pred_check_branch
          %200 = sbr.rel (%p198) target = $region36
        $region35: #{tpu_custom_call.1} parent=31 // pred_region
          %s201 = smul.u32 2, %s23
          %p202 = scmp.lt.s32.totalorder %s22, 1
          %s203 = scalar_select %p202, %s22, 1
          %p204 = scmp.lt.s32.totalorder %s201, 1
          %s205 = scalar_select %p204, %s201, 1
          %s206 = smul.addr %s203, 2
          %s207 = sadd.s32 %s205, %s206
          %s208 = smul.addr %s207, 4
          %s209 = scalar_lea.vmem %s0, %s208
          %s210 = smul.u32 2, %s23
        $region36: #{tpu_custom_call.1} parent=31 // pred_fallthru
          _
      $region32: #{tpu_custom_call.1} parent=5 // pred_fallthru
        _
      %p211 = scmp.le.s32.totalorder 1, %s15
      %p212 = scmp.lt.s32.totalorder %s15, 3
      %p213 = pnand %p211, %p212
      %p214 = pneg %p213
      // Predicated region
      $region37: #{tpu_custom_call.1} parent=5 // pred_check
        _
      $region38: #{tpu_custom_call.1} parent=5 // pred_check_branch
        %216 = sbr.rel (%p213) target = $region40
      $region39: #{tpu_custom_call.1} parent=5 // pred_region
        %s217 = ssub.s32 %s15, 1
        %s218 = smul.u32 2, %s25
        %p219 = scmp.lt.s32.totalorder %s24, 1
        %s220 = scalar_select %p219, %s24, 1
        %p221 = scmp.lt.s32.totalorder %s218, 1
        %s222 = scalar_select %p221, %s218, 1
        %s223 = smul.addr %s220, 2
        %s224 = sadd.s32 %s222, %s223
        %s225 = smul.addr %s224, 4
        %s226 = scalar_lea.vmem %s0, %s225
        %p227 = pneg %p55
        %p228 = pneg %p52
        %p229 = pneg %p76
        %p230 = pneg %p73
        %p231 = pneg %p97
        %p232 = pneg %p94
        %p233 = pneg %p118
        %p234 = pneg %p115
        %p235 = pneg %p139
        %p236 = pneg %p136
        %p237 = pneg %p167
        %p238 = pneg %p164
        %s239 = sand.u32 %s154, 1
        %s240 = scalar_lea.sflag [#allocation4], %s239
        %s241 = sand.u32 %s154, 1
        %s242 = smul.addr %s241, 2
        %s243 = scalar_lea.vmem [#allocation3], %s242
        %s244 = smul.u32 2, %s25
        %p245 = scmp.lt.s32.totalorder %s24, 1
        %s246 = scalar_select %p245, %s24, 1
        %p247 = scmp.lt.s32.totalorder %s244, 1
        %s248 = scalar_select %p247, %s244, 1
        %s249 = smul.addr %s246, 2
        %s250 = sadd.s32 %s248, %s249
        %s251 = smul.addr %s250, 4
        %s252 = scalar_lea.vmem %s0, %s251
        %s253 = smul.u32 2, %s25
        %s254 = smul.u32 2, %s25
        %v255 = vld [vmem:[%s252] sm:$0xff]
        %v256 = vld [vmem:[%s1] sm:$0xff]
        %v257 = vld [vmem:[%s1 + $0x8] sm:$0xff]
        %v258 = vld [vmem:[%s1 + $0x10] sm:$0xff]
        %v259 = vld [vmem:[%s1 + $0x18] sm:$0xff]
        %v260 = vld [vmem:[%s1 + $0x20] sm:$0xff]
        %v261 = vld [vmem:[%s1 + $0x28] sm:$0xff]
        %v262 = vld [vmem:[%s1 + $0x30] sm:$0xff]
        %v263 = vld [vmem:[%s1 + $0x38] sm:$0xff]
        %v264 = vld [vmem:[%s1 + $0x40] sm:$0xff]
        %v265 = vld [vmem:[%s1 + $0x48] sm:$0xff]
        %v266 = vld [vmem:[%s1 + $0x50] sm:$0xff]
        %v267 = vld [vmem:[%s1 + $0x58] sm:$0xff]
        %v268 = vld [vmem:[%s1 + $0x60] sm:$0xff]
        %v269 = vld [vmem:[%s1 + $0x68] sm:$0xff]
        %v270 = vld [vmem:[%s1 + $0x70] sm:$0xff]
        %v271 = vld [vmem:[%s1 + $0x78] sm:$0xff]
        %v272 = vld [vmem:[%s1 + $0x80] sm:$0xff]
        %v273 = vld [vmem:[%s1 + $0x88] sm:$0xff]
        %v274 = vld [vmem:[%s1 + $0x90] sm:$0xff]
        %v275 = vld [vmem:[%s1 + $0x98] sm:$0xff]
        %v276 = vld [vmem:[%s1 + $0xa0] sm:$0xff]
        %v277 = vld [vmem:[%s1 + $0xa8] sm:$0xff]
        %v278 = vld [vmem:[%s1 + $0xb0] sm:$0xff]
        %v279 = vld [vmem:[%s1 + $0xb8] sm:$0xff]
        %v280 = vld [vmem:[%s1 + $0xc0] sm:$0xff]
        %v281 = vld [vmem:[%s1 + $0xc8] sm:$0xff]
        %v282 = vld [vmem:[%s1 + $0xd0] sm:$0xff]
        %v283 = vld [vmem:[%s1 + $0xd8] sm:$0xff]
        %v284 = vld [vmem:[%s1 + $0xe0] sm:$0xff]
        %v285 = vld [vmem:[%s1 + $0xe8] sm:$0xff]
        %v286 = vld [vmem:[%s1 + $0xf0] sm:$0xff]
        %v287 = vld [vmem:[%s1 + $0xf8] sm:$0xff]
        %v288 = vld [vmem:[%s1 + $0x100] sm:$0xff]
        %v289 = vld [vmem:[%s1 + $0x108] sm:$0xff]
        %v290 = vld [vmem:[%s1 + $0x110] sm:$0xff]
        %v291 = vld [vmem:[%s1 + $0x118] sm:$0xff]
        %v292 = vld [vmem:[%s1 + $0x120] sm:$0xff]
        %v293 = vld [vmem:[%s1 + $0x128] sm:$0xff]
        %v294 = vld [vmem:[%s1 + $0x130] sm:$0xff]
        %v295 = vld [vmem:[%s1 + $0x138] sm:$0xff]
        %v296 = vld [vmem:[%s1 + $0x140] sm:$0xff]
        %v297 = vld [vmem:[%s1 + $0x148] sm:$0xff]
        %v298 = vld [vmem:[%s1 + $0x150] sm:$0xff]
        %v299 = vld [vmem:[%s1 + $0x158] sm:$0xff]
        %v300 = vld [vmem:[%s1 + $0x160] sm:$0xff]
        %v301 = vld [vmem:[%s1 + $0x168] sm:$0xff]
        %v302 = vld [vmem:[%s1 + $0x170] sm:$0xff]
        %v303 = vld [vmem:[%s1 + $0x178] sm:$0xff]
        %v304 = vld [vmem:[%s1 + $0x180] sm:$0xff]
        %v305 = vld [vmem:[%s1 + $0x188] sm:$0xff]
        %v306 = vld [vmem:[%s1 + $0x190] sm:$0xff]
        %v307 = vld [vmem:[%s1 + $0x198] sm:$0xff]
        %v308 = vld [vmem:[%s1 + $0x1a0] sm:$0xff]
        %v309 = vld [vmem:[%s1 + $0x1a8] sm:$0xff]
        %v310 = vld [vmem:[%s1 + $0x1b0] sm:$0xff]
        %v311 = vld [vmem:[%s1 + $0x1b8] sm:$0xff]
        %v312 = vld [vmem:[%s1 + $0x1c0] sm:$0xff]
        %v313 = vld [vmem:[%s1 + $0x1c8] sm:$0xff]
        %v314 = vld [vmem:[%s1 + $0x1d0] sm:$0xff]
        %v315 = vld [vmem:[%s1 + $0x1d8] sm:$0xff]
        %v316 = vld [vmem:[%s1 + $0x1e0] sm:$0xff]
        %v317 = vld [vmem:[%s1 + $0x1e8] sm:$0xff]
        %v318 = vld [vmem:[%s1 + $0x1f0] sm:$0xff]
        %v319 = vld [vmem:[%s1 + $0x1f8] sm:$0xff]
        %v320 = vld [vmem:[%s2] sm:$0xff]
        %v321 = vld [vmem:[%s2 + $0x8] sm:$0xff]
        %v322 = vld [vmem:[%s2 + $0x10] sm:$0xff]
        %v323 = vld [vmem:[%s2 + $0x18] sm:$0xff]
        %v324 = vld [vmem:[%s2 + $0x20] sm:$0xff]
        %v325 = vld [vmem:[%s2 + $0x28] sm:$0xff]
        %v326 = vld [vmem:[%s2 + $0x30] sm:$0xff]
        %v327 = vld [vmem:[%s2 + $0x38] sm:$0xff]
        %v328 = vld [vmem:[%s2 + $0x40] sm:$0xff]
        %v329 = vld [vmem:[%s2 + $0x48] sm:$0xff]
        %v330 = vld [vmem:[%s2 + $0x50] sm:$0xff]
        %v331 = vld [vmem:[%s2 + $0x58] sm:$0xff]
        %v332 = vld [vmem:[%s2 + $0x60] sm:$0xff]
        %v333 = vld [vmem:[%s2 + $0x68] sm:$0xff]
        %v334 = vld [vmem:[%s2 + $0x70] sm:$0xff]
        %v335 = vld [vmem:[%s2 + $0x78] sm:$0xff]
        %v336 = vld [vmem:[%s2 + $0x80] sm:$0xff]
        %v337 = vld [vmem:[%s2 + $0x88] sm:$0xff]
        %v338 = vld [vmem:[%s2 + $0x90] sm:$0xff]
        %v339 = vld [vmem:[%s2 + $0x98] sm:$0xff]
        %v340 = vld [vmem:[%s2 + $0xa0] sm:$0xff]
        %v341 = vld [vmem:[%s2 + $0xa8] sm:$0xff]
        %v342 = vld [vmem:[%s2 + $0xb0] sm:$0xff]
        %v343 = vld [vmem:[%s2 + $0xb8] sm:$0xff]
        %v344 = vld [vmem:[%s2 + $0xc0] sm:$0xff]
        %v345 = vld [vmem:[%s2 + $0xc8] sm:$0xff]
        %v346 = vld [vmem:[%s2 + $0xd0] sm:$0xff]
        %v347 = vld [vmem:[%s2 + $0xd8] sm:$0xff]
        %v348 = vld [vmem:[%s2 + $0xe0] sm:$0xff]
        %v349 = vld [vmem:[%s2 + $0xe8] sm:$0xff]
        %v350 = vld [vmem:[%s2 + $0xf0] sm:$0xff]
        %v351 = vld [vmem:[%s2 + $0xf8] sm:$0xff]
        %v352 = vld [vmem:[%s2 + $0x100] sm:$0xff]
        %v353 = vld [vmem:[%s2 + $0x108] sm:$0xff]
        %v354 = vld [vmem:[%s2 + $0x110] sm:$0xff]
        %v355 = vld [vmem:[%s2 + $0x118] sm:$0xff]
        %v356 = vld [vmem:[%s2 + $0x120] sm:$0xff]
        %v357 = vld [vmem:[%s2 + $0x128] sm:$0xff]
        %v358 = vld [vmem:[%s2 + $0x130] sm:$0xff]
        %v359 = vld [vmem:[%s2 + $0x138] sm:$0xff]
        %v360 = vld [vmem:[%s2 + $0x140] sm:$0xff]
        %v361 = vld [vmem:[%s2 + $0x148] sm:$0xff]
        %v362 = vld [vmem:[%s2 + $0x150] sm:$0xff]
        %v363 = vld [vmem:[%s2 + $0x158] sm:$0xff]
        %v364 = vld [vmem:[%s2 + $0x160] sm:$0xff]
        %v365 = vld [vmem:[%s2 + $0x168] sm:$0xff]
        %v366 = vld [vmem:[%s2 + $0x170] sm:$0xff]
        %v367 = vld [vmem:[%s2 + $0x178] sm:$0xff]
        %v368 = vld [vmem:[%s2 + $0x180] sm:$0xff]
        %v369 = vld [vmem:[%s2 + $0x188] sm:$0xff]
        %v370 = vld [vmem:[%s2 + $0x190] sm:$0xff]
        %v371 = vld [vmem:[%s2 + $0x198] sm:$0xff]
        %v372 = vld [vmem:[%s2 + $0x1a0] sm:$0xff]
        %v373 = vld [vmem:[%s2 + $0x1a8] sm:$0xff]
        %v374 = vld [vmem:[%s2 + $0x1b0] sm:$0xff]
        %v375 = vld [vmem:[%s2 + $0x1b8] sm:$0xff]
        %v376 = vld [vmem:[%s2 + $0x1c0] sm:$0xff]
        %v377 = vld [vmem:[%s2 + $0x1c8] sm:$0xff]
        %v378 = vld [vmem:[%s2 + $0x1d0] sm:$0xff]
        %v379 = vld [vmem:[%s2 + $0x1d8] sm:$0xff]
        %v380 = vld [vmem:[%s2 + $0x1e0] sm:$0xff]
        %v381 = vld [vmem:[%s2 + $0x1e8] sm:$0xff]
        %v382 = vld [vmem:[%s2 + $0x1f0] sm:$0xff]
        %v383 = vld [vmem:[%s2 + $0x1f8] sm:$0xff]
        %385 = vset.pattern.permute.xlu0 0
        %386 = vperm.xlu0 %385, %v320
        %v387 = vpop.permute.xlu0 %386
        %390 = vset.pattern.permute.xlu0 0
        %391 = vperm.xlu0 %390, %v321
        %v392 = vpop.permute.xlu0 %391
        %395 = vset.pattern.permute.xlu0 0
        %396 = vperm.xlu0 %395, %v322
        %v397 = vpop.permute.xlu0 %396
        %400 = vset.pattern.permute.xlu0 0
        %401 = vperm.xlu0 %400, %v323
        %v402 = vpop.permute.xlu0 %401
        %405 = vset.pattern.permute.xlu0 0
        %406 = vperm.xlu0 %405, %v324
        %v407 = vpop.permute.xlu0 %406
        %410 = vset.pattern.permute.xlu0 0
        %411 = vperm.xlu0 %410, %v325
        %v412 = vpop.permute.xlu0 %411
        %415 = vset.pattern.permute.xlu0 0
        %416 = vperm.xlu0 %415, %v326
        %v417 = vpop.permute.xlu0 %416
        %420 = vset.pattern.permute.xlu0 0
        %421 = vperm.xlu0 %420, %v327
        %v422 = vpop.permute.xlu0 %421
        %425 = vset.pattern.permute.xlu0 0
        %426 = vperm.xlu0 %425, %v328
        %v427 = vpop.permute.xlu0 %426
        %430 = vset.pattern.permute.xlu0 0
        %431 = vperm.xlu0 %430, %v329
        %v432 = vpop.permute.xlu0 %431
        %435 = vset.pattern.permute.xlu0 0
        %436 = vperm.xlu0 %435, %v330
        %v437 = vpop.permute.xlu0 %436
        %440 = vset.pattern.permute.xlu0 0
        %441 = vperm.xlu0 %440, %v331
        %v442 = vpop.permute.xlu0 %441
        %445 = vset.pattern.permute.xlu0 0
        %446 = vperm.xlu0 %445, %v332
        %v447 = vpop.permute.xlu0 %446
        %450 = vset.pattern.permute.xlu0 0
        %451 = vperm.xlu0 %450, %v333
        %v452 = vpop.permute.xlu0 %451
        %455 = vset.pattern.permute.xlu0 0
        %456 = vperm.xlu0 %455, %v334
        %v457 = vpop.permute.xlu0 %456
        %460 = vset.pattern.permute.xlu0 0
        %461 = vperm.xlu0 %460, %v335
        %v462 = vpop.permute.xlu0 %461
        %465 = vset.pattern.permute.xlu0 0
        %466 = vperm.xlu0 %465, %v336
        %v467 = vpop.permute.xlu0 %466
        %470 = vset.pattern.permute.xlu0 0
        %471 = vperm.xlu0 %470, %v337
        %v472 = vpop.permute.xlu0 %471
        %475 = vset.pattern.permute.xlu0 0
        %476 = vperm.xlu0 %475, %v338
        %v477 = vpop.permute.xlu0 %476
        %480 = vset.pattern.permute.xlu0 0
        %481 = vperm.xlu0 %480, %v339
        %v482 = vpop.permute.xlu0 %481
        %485 = vset.pattern.permute.xlu0 0
        %486 = vperm.xlu0 %485, %v340
        %v487 = vpop.permute.xlu0 %486
        %490 = vset.pattern.permute.xlu0 0
        %491 = vperm.xlu0 %490, %v341
        %v492 = vpop.permute.xlu0 %491
        %495 = vset.pattern.permute.xlu0 0
        %496 = vperm.xlu0 %495, %v342
        %v497 = vpop.permute.xlu0 %496
        %500 = vset.pattern.permute.xlu0 0
        %501 = vperm.xlu0 %500, %v343
        %v502 = vpop.permute.xlu0 %501
        %505 = vset.pattern.permute.xlu0 0
        %506 = vperm.xlu0 %505, %v344
        %v507 = vpop.permute.xlu0 %506
        %510 = vset.pattern.permute.xlu0 0
        %511 = vperm.xlu0 %510, %v345
        %v512 = vpop.permute.xlu0 %511
        %515 = vset.pattern.permute.xlu0 0
        %516 = vperm.xlu0 %515, %v346
        %v517 = vpop.permute.xlu0 %516
        %520 = vset.pattern.permute.xlu0 0
        %521 = vperm.xlu0 %520, %v347
        %v522 = vpop.permute.xlu0 %521
        %525 = vset.pattern.permute.xlu0 0
        %526 = vperm.xlu0 %525, %v348
        %v527 = vpop.permute.xlu0 %526
        %530 = vset.pattern.permute.xlu0 0
        %531 = vperm.xlu0 %530, %v349
        %v532 = vpop.permute.xlu0 %531
        %535 = vset.pattern.permute.xlu0 0
        %536 = vperm.xlu0 %535, %v350
        %v537 = vpop.permute.xlu0 %536
        %540 = vset.pattern.permute.xlu0 0
        %541 = vperm.xlu0 %540, %v351
        %v542 = vpop.permute.xlu0 %541
        %545 = vset.pattern.permute.xlu0 0
        %546 = vperm.xlu0 %545, %v352
        %v547 = vpop.permute.xlu0 %546
        %550 = vset.pattern.permute.xlu0 0
        %551 = vperm.xlu0 %550, %v353
        %v552 = vpop.permute.xlu0 %551
        %555 = vset.pattern.permute.xlu0 0
        %556 = vperm.xlu0 %555, %v354
        %v557 = vpop.permute.xlu0 %556
        %560 = vset.pattern.permute.xlu0 0
        %561 = vperm.xlu0 %560, %v355
        %v562 = vpop.permute.xlu0 %561
        %565 = vset.pattern.permute.xlu0 0
        %566 = vperm.xlu0 %565, %v356
        %v567 = vpop.permute.xlu0 %566
        %570 = vset.pattern.permute.xlu0 0
        %571 = vperm.xlu0 %570, %v357
        %v572 = vpop.permute.xlu0 %571
        %575 = vset.pattern.permute.xlu0 0
        %576 = vperm.xlu0 %575, %v358
        %v577 = vpop.permute.xlu0 %576
        %580 = vset.pattern.permute.xlu0 0
        %581 = vperm.xlu0 %580, %v359
        %v582 = vpop.permute.xlu0 %581
        %585 = vset.pattern.permute.xlu0 0
        %586 = vperm.xlu0 %585, %v360
        %v587 = vpop.permute.xlu0 %586
        %590 = vset.pattern.permute.xlu0 0
        %591 = vperm.xlu0 %590, %v361
        %v592 = vpop.permute.xlu0 %591
        %595 = vset.pattern.permute.xlu0 0
        %596 = vperm.xlu0 %595, %v362
        %v597 = vpop.permute.xlu0 %596
        %600 = vset.pattern.permute.xlu0 0
        %601 = vperm.xlu0 %600, %v363
        %v602 = vpop.permute.xlu0 %601
        %605 = vset.pattern.permute.xlu0 0
        %606 = vperm.xlu0 %605, %v364
        %v607 = vpop.permute.xlu0 %606
        %610 = vset.pattern.permute.xlu0 0
        %611 = vperm.xlu0 %610, %v365
        %v612 = vpop.permute.xlu0 %611
        %615 = vset.pattern.permute.xlu0 0
        %616 = vperm.xlu0 %615, %v366
        %v617 = vpop.permute.xlu0 %616
        %620 = vset.pattern.permute.xlu0 0
        %621 = vperm.xlu0 %620, %v367
        %v622 = vpop.permute.xlu0 %621
        %625 = vset.pattern.permute.xlu0 0
        %626 = vperm.xlu0 %625, %v368
        %v627 = vpop.permute.xlu0 %626
        %630 = vset.pattern.permute.xlu0 0
        %631 = vperm.xlu0 %630, %v369
        %v632 = vpop.permute.xlu0 %631
        %635 = vset.pattern.permute.xlu0 0
        %636 = vperm.xlu0 %635, %v370
        %v637 = vpop.permute.xlu0 %636
        %640 = vset.pattern.permute.xlu0 0
        %641 = vperm.xlu0 %640, %v371
        %v642 = vpop.permute.xlu0 %641
        %645 = vset.pattern.permute.xlu0 0
        %646 = vperm.xlu0 %645, %v372
        %v647 = vpop.permute.xlu0 %646
        %650 = vset.pattern.permute.xlu0 0
        %651 = vperm.xlu0 %650, %v373
        %v652 = vpop.permute.xlu0 %651
        %655 = vset.pattern.permute.xlu0 0
        %656 = vperm.xlu0 %655, %v374
        %v657 = vpop.permute.xlu0 %656
        %660 = vset.pattern.permute.xlu0 0
        %661 = vperm.xlu0 %660, %v375
        %v662 = vpop.permute.xlu0 %661
        %665 = vset.pattern.permute.xlu0 0
        %666 = vperm.xlu0 %665, %v376
        %v667 = vpop.permute.xlu0 %666
        %670 = vset.pattern.permute.xlu0 0
        %671 = vperm.xlu0 %670, %v377
        %v672 = vpop.permute.xlu0 %671
        %675 = vset.pattern.permute.xlu0 0
        %676 = vperm.xlu0 %675, %v378
        %v677 = vpop.permute.xlu0 %676
        %680 = vset.pattern.permute.xlu0 0
        %681 = vperm.xlu0 %680, %v379
        %v682 = vpop.permute.xlu0 %681
        %685 = vset.pattern.permute.xlu0 0
        %686 = vperm.xlu0 %685, %v380
        %v687 = vpop.permute.xlu0 %686
        %690 = vset.pattern.permute.xlu0 0
        %691 = vperm.xlu0 %690, %v381
        %v692 = vpop.permute.xlu0 %691
        %695 = vset.pattern.permute.xlu0 0
        %696 = vperm.xlu0 %695, %v382
        %v697 = vpop.permute.xlu0 %696
        %700 = vset.pattern.permute.xlu0 0
        %701 = vperm.xlu0 %700, %v383
        %v702 = vpop.permute.xlu0 %701
        %v705 = vcombine.high %v255, %v255
        %vm706 = vcmask 31744
        %v708 = vsel %vm706, %v256, 0
        %v711 = vsel %vm706, %v257, 0
        %v714 = vsel %vm706, %v258, 0
        %v717 = vsel %vm706, %v259, 0
        %v720 = vsel %vm706, %v260, 0
        %v723 = vsel %vm706, %v261, 0
        %v726 = vsel %vm706, %v262, 0
        %v729 = vsel %vm706, %v263, 0
        %v732 = vsel %vm706, %v264, 0
        %v735 = vsel %vm706, %v265, 0
        %v738 = vsel %vm706, %v266, 0
        %v741 = vsel %vm706, %v267, 0
        %v744 = vsel %vm706, %v268, 0
        %v747 = vsel %vm706, %v269, 0
        %v750 = vsel %vm706, %v270, 0
        %v753 = vsel %vm706, %v271, 0
        %v756 = vsel %vm706, %v272, 0
        %v759 = vsel %vm706, %v273, 0
        %v762 = vsel %vm706, %v274, 0
        %v765 = vsel %vm706, %v275, 0
        %v768 = vsel %vm706, %v276, 0
        %v771 = vsel %vm706, %v277, 0
        %v774 = vsel %vm706, %v278, 0
        %v777 = vsel %vm706, %v279, 0
        %v780 = vsel %vm706, %v280, 0
        %v783 = vsel %vm706, %v281, 0
        %v786 = vsel %vm706, %v282, 0
        %v789 = vsel %vm706, %v283, 0
        %v792 = vsel %vm706, %v284, 0
        %v795 = vsel %vm706, %v285, 0
        %v798 = vsel %vm706, %v286, 0
        %v801 = vsel %vm706, %v287, 0
        %v804 = vsel %vm706, %v288, 0
        %v807 = vsel %vm706, %v289, 0
        %v810 = vsel %vm706, %v290, 0
        %v813 = vsel %vm706, %v291, 0
        %v816 = vsel %vm706, %v292, 0
        %v819 = vsel %vm706, %v293, 0
        %v822 = vsel %vm706, %v294, 0
        %v825 = vsel %vm706, %v295, 0
        %v828 = vsel %vm706, %v296, 0
        %v831 = vsel %vm706, %v297, 0
        %v834 = vsel %vm706, %v298, 0
        %v837 = vsel %vm706, %v299, 0
        %v840 = vsel %vm706, %v300, 0
        %v843 = vsel %vm706, %v301, 0
        %v846 = vsel %vm706, %v302, 0
        %v849 = vsel %vm706, %v303, 0
        %v852 = vsel %vm706, %v304, 0
        %v855 = vsel %vm706, %v305, 0
        %v858 = vsel %vm706, %v306, 0
        %v861 = vsel %vm706, %v307, 0
        %v864 = vsel %vm706, %v308, 0
        %v867 = vsel %vm706, %v309, 0
        %v870 = vsel %vm706, %v310, 0
        %v873 = vsel %vm706, %v311, 0
        %v876 = vsel %vm706, %v312, 0
        %v879 = vsel %vm706, %v313, 0
        %v882 = vsel %vm706, %v314, 0
        %v885 = vsel %vm706, %v315, 0
        %v888 = vsel %vm706, %v316, 0
        %v891 = vsel %vm706, %v317, 0
        %v894 = vsel %vm706, %v318, 0
        %v897 = vsel %vm706, %v319, 0
        %vm899 = vcmask 1043456
        %v900 = vsel %vm899, %v255, 0
        %v902 = vsel %vm899, %v705, 0
        %904 = vmatprep.subr.mxu0 0.0
        %905 = vmatpush1.msra.mxu0 0.0
        %906 = vmatprep.subr.mxu0 0.0
        %907 = vmatpush1.msra.mxu0 0.0
        %908 = vmatprep.subr.mxu0 0.0
        %909 = vmatpush1.msra.mxu0 0.0
        %910 = vmatprep.subr.mxu0 0.0
        %911 = vmatpush1.msra.mxu0 0.0
        %912 = vmatprep.subr.mxu0 0.0
        %913 = vmatpush1.msra.mxu0 0.0
        %914 = vmatprep.subr.mxu0 0.0
        %915 = vmatpush1.msra.mxu0 0.0
        %916 = vmatprep.subr.mxu0 0.0
        %917 = vmatpush1.msra.mxu0 0.0
        %918 = vmatprep.subr.mxu0 0.0
        %919 = vmatpush1.msra.mxu0 0.0
        %920 = vmatprep.subr.mxu0 0.0
        %921 = vmatpush1.msra.mxu0 0.0
        %922 = vmatprep.subr.mxu0 0.0
        %923 = vmatpush1.msra.mxu0 0.0
        %924 = vmatprep.subr.mxu0 0.0
        %925 = vmatpush1.msra.mxu0 0.0
        %926 = vmatprep.subr.mxu0 0.0
        %927 = vmatpush1.msra.mxu0 0.0
        %928 = vmatprep.subr.mxu0 0.0
        %929 = vmatpush1.msra.mxu0 0.0
        %930 = vmatprep.subr.mxu0 0.0
        %931 = vmatpush1.msra.mxu0 0.0
        %932 = vmatprep.subr.mxu0 0.0
        %933 = vmatpush1.msra.mxu0 0.0
        %934 = vmatprep.subr.mxu0 %v902
        %935 = vmatpush1.msra.mxu0 %v900
        %936 = vmatprep.subr.mxu0 0.0
        %937 = vmatpush2.msra.mxu0 0.0
        %938 = vmatprep.subr.mxu0 0.0
        %939 = vmatpush2.msra.mxu0 0.0
        %940 = vmatprep.subr.mxu0 0.0
        %941 = vmatpush2.msra.mxu0 0.0
        %942 = vmatprep.subr.mxu0 0.0
        %943 = vmatpush2.msra.mxu0 0.0
        %944 = vmatprep.subr.mxu0 0.0
        %945 = vmatpush2.msra.mxu0 0.0
        %946 = vmatprep.subr.mxu0 0.0
        %947 = vmatpush2.msra.mxu0 0.0
        %948 = vmatprep.subr.mxu0 0.0
        %949 = vmatpush2.msra.mxu0 0.0
        %950 = vmatprep.subr.mxu0 0.0
        %951 = vmatpush2.msra.mxu0 0.0
        %952 = vmatprep.subr.mxu0 0.0
        %953 = vmatpush2.msra.mxu0 0.0
        %954 = vmatprep.subr.mxu0 0.0
        %955 = vmatpush2.msra.mxu0 0.0
        %956 = vmatprep.subr.mxu0 0.0
        %957 = vmatpush2.msra.mxu0 0.0
        %958 = vmatprep.subr.mxu0 0.0
        %959 = vmatpush2.msra.mxu0 0.0
        %960 = vmatprep.subr.mxu0 0.0
        %961 = vmatpush2.msra.mxu0 0.0
        %962 = vmatprep.subr.mxu0 0.0
        %963 = vmatpush2.msra.mxu0 0.0
        %964 = vmatprep.subr.mxu0 0.0
        %965 = vmatpush2.msra.mxu0 0.0
        %966 = vmatprep.subr.mxu0 0.0
        %967 = vmatpush2.msra.mxu0 0.0
        %968 = vmatprep.mubr.f32.mxu0 0.0
        %969 = vmatmul.mubr.f32.gmra.mxu0 %v708
        %v970 = vpop.f32.mrf.mxu0
        %v971 = vadd.f32 %v387, %v970
        %v972 = vpop.f32.mrf.mxu0
        %v973 = vadd.f32 %v387, %v972
        %974 = vmatprep.mubr.f32.mxu0 0.0
        %975 = vmatmul.mubr.f32.gmra.mxu0 %v711
        %v976 = vpop.f32.mrf.mxu0
        %v977 = vadd.f32 %v392, %v976
        %v978 = vpop.f32.mrf.mxu0
        %v979 = vadd.f32 %v392, %v978
        %980 = vmatprep.mubr.f32.mxu0 0.0
        %981 = vmatmul.mubr.f32.gmra.mxu0 %v714
        %v982 = vpop.f32.mrf.mxu0
        %v983 = vadd.f32 %v397, %v982
        %v984 = vpop.f32.mrf.mxu0
        %v985 = vadd.f32 %v397, %v984
        %986 = vmatprep.mubr.f32.mxu0 0.0
        %987 = vmatmul.mubr.f32.gmra.mxu0 %v717
        %v988 = vpop.f32.mrf.mxu0
        %v989 = vadd.f32 %v402, %v988
        %v990 = vpop.f32.mrf.mxu0
        %v991 = vadd.f32 %v402, %v990
        %992 = vmatprep.mubr.f32.mxu0 0.0
        %993 = vmatmul.mubr.f32.gmra.mxu0 %v720
        %v994 = vpop.f32.mrf.mxu0
        %v995 = vadd.f32 %v407, %v994
        %v996 = vpop.f32.mrf.mxu0
        %v997 = vadd.f32 %v407, %v996
        %998 = vmatprep.mubr.f32.mxu0 0.0
        %999 = vmatmul.mubr.f32.gmra.mxu0 %v723
        %v1000 = vpop.f32.mrf.mxu0
        %v1001 = vadd.f32 %v412, %v1000
        %v1002 = vpop.f32.mrf.mxu0
        %v1003 = vadd.f32 %v412, %v1002
        %1004 = vmatprep.mubr.f32.mxu0 0.0
        %1005 = vmatmul.mubr.f32.gmra.mxu0 %v726
        %v1006 = vpop.f32.mrf.mxu0
        %v1007 = vadd.f32 %v417, %v1006
        %v1008 = vpop.f32.mrf.mxu0
        %v1009 = vadd.f32 %v417, %v1008
        %1010 = vmatprep.mubr.f32.mxu0 0.0
        %1011 = vmatmul.mubr.f32.gmra.mxu0 %v729
        %v1012 = vpop.f32.mrf.mxu0
        %v1013 = vadd.f32 %v422, %v1012
        %v1014 = vpop.f32.mrf.mxu0
        %v1015 = vadd.f32 %v422, %v1014
        %1016 = vmatprep.mubr.f32.mxu0 0.0
        %1017 = vmatmul.mubr.f32.gmra.mxu0 %v732
        %v1018 = vpop.f32.mrf.mxu0
        %v1019 = vadd.f32 %v427, %v1018
        %v1020 = vpop.f32.mrf.mxu0
        %v1021 = vadd.f32 %v427, %v1020
        %1022 = vmatprep.mubr.f32.mxu0 0.0
        %1023 = vmatmul.mubr.f32.gmra.mxu0 %v735
        %v1024 = vpop.f32.mrf.mxu0
        %v1025 = vadd.f32 %v432, %v1024
        %v1026 = vpop.f32.mrf.mxu0
        %v1027 = vadd.f32 %v432, %v1026
        %1028 = vmatprep.mubr.f32.mxu0 0.0
        %1029 = vmatmul.mubr.f32.gmra.mxu0 %v738
        %v1030 = vpop.f32.mrf.mxu0
        %v1031 = vadd.f32 %v437, %v1030
        %v1032 = vpop.f32.mrf.mxu0
        %v1033 = vadd.f32 %v437, %v1032
        %1034 = vmatprep.mubr.f32.mxu0 0.0
        %1035 = vmatmul.mubr.f32.gmra.mxu0 %v741
        %v1036 = vpop.f32.mrf.mxu0
        %v1037 = vadd.f32 %v442, %v1036
        %v1038 = vpop.f32.mrf.mxu0
        %v1039 = vadd.f32 %v442, %v1038
        %1040 = vmatprep.mubr.f32.mxu0 0.0
        %1041 = vmatmul.mubr.f32.gmra.mxu0 %v744
        %v1042 = vpop.f32.mrf.mxu0
        %v1043 = vadd.f32 %v447, %v1042
        %v1044 = vpop.f32.mrf.mxu0
        %v1045 = vadd.f32 %v447, %v1044
        %1046 = vmatprep.mubr.f32.mxu0 0.0
        %1047 = vmatmul.mubr.f32.gmra.mxu0 %v747
        %v1048 = vpop.f32.mrf.mxu0
        %v1049 = vadd.f32 %v452, %v1048
        %v1050 = vpop.f32.mrf.mxu0
        %v1051 = vadd.f32 %v452, %v1050
        %1052 = vmatprep.mubr.f32.mxu0 0.0
        %1053 = vmatmul.mubr.f32.gmra.mxu0 %v750
        %v1054 = vpop.f32.mrf.mxu0
        %v1055 = vadd.f32 %v457, %v1054
        %v1056 = vpop.f32.mrf.mxu0
        %v1057 = vadd.f32 %v457, %v1056
        %1058 = vmatprep.mubr.f32.mxu0 0.0
        %1059 = vmatmul.mubr.f32.gmra.mxu0 %v753
        %v1060 = vpop.f32.mrf.mxu0
        %v1061 = vadd.f32 %v462, %v1060
        %v1062 = vpop.f32.mrf.mxu0
        %v1063 = vadd.f32 %v462, %v1062
        %1064 = vmatprep.mubr.f32.mxu0 0.0
        %1065 = vmatmul.mubr.f32.gmra.mxu0 %v756
        %v1066 = vpop.f32.mrf.mxu0
        %v1067 = vadd.f32 %v467, %v1066
        %v1068 = vpop.f32.mrf.mxu0
        %v1069 = vadd.f32 %v467, %v1068
        %1070 = vmatprep.mubr.f32.mxu0 0.0
        %1071 = vmatmul.mubr.f32.gmra.mxu0 %v759
        %v1072 = vpop.f32.mrf.mxu0
        %v1073 = vadd.f32 %v472, %v1072
        %v1074 = vpop.f32.mrf.mxu0
        %v1075 = vadd.f32 %v472, %v1074
        %1076 = vmatprep.mubr.f32.mxu0 0.0
        %1077 = vmatmul.mubr.f32.gmra.mxu0 %v762
        %v1078 = vpop.f32.mrf.mxu0
        %v1079 = vadd.f32 %v477, %v1078
        %v1080 = vpop.f32.mrf.mxu0
        %v1081 = vadd.f32 %v477, %v1080
        %1082 = vmatprep.mubr.f32.mxu0 0.0
        %1083 = vmatmul.mubr.f32.gmra.mxu0 %v765
        %v1084 = vpop.f32.mrf.mxu0
        %v1085 = vadd.f32 %v482, %v1084
        %v1086 = vpop.f32.mrf.mxu0
        %v1087 = vadd.f32 %v482, %v1086
        %1088 = vmatprep.mubr.f32.mxu0 0.0
        %1089 = vmatmul.mubr.f32.gmra.mxu0 %v768
        %v1090 = vpop.f32.mrf.mxu0
        %v1091 = vadd.f32 %v487, %v1090
        %v1092 = vpop.f32.mrf.mxu0
        %v1093 = vadd.f32 %v487, %v1092
        %1094 = vmatprep.mubr.f32.mxu0 0.0
        %1095 = vmatmul.mubr.f32.gmra.mxu0 %v771
        %v1096 = vpop.f32.mrf.mxu0
        %v1097 = vadd.f32 %v492, %v1096
        %v1098 = vpop.f32.mrf.mxu0
        %v1099 = vadd.f32 %v492, %v1098
        %1100 = vmatprep.mubr.f32.mxu0 0.0
        %1101 = vmatmul.mubr.f32.gmra.mxu0 %v774
        %v1102 = vpop.f32.mrf.mxu0
        %v1103 = vadd.f32 %v497, %v1102
        %v1104 = vpop.f32.mrf.mxu0
        %v1105 = vadd.f32 %v497, %v1104
        %1106 = vmatprep.mubr.f32.mxu0 0.0
        %1107 = vmatmul.mubr.f32.gmra.mxu0 %v777
        %v1108 = vpop.f32.mrf.mxu0
        %v1109 = vadd.f32 %v502, %v1108
        %v1110 = vpop.f32.mrf.mxu0
        %v1111 = vadd.f32 %v502, %v1110
        %1112 = vmatprep.mubr.f32.mxu0 0.0
        %1113 = vmatmul.mubr.f32.gmra.mxu0 %v780
        %v1114 = vpop.f32.mrf.mxu0
        %v1115 = vadd.f32 %v507, %v1114
        %v1116 = vpop.f32.mrf.mxu0
        %v1117 = vadd.f32 %v507, %v1116
        %1118 = vmatprep.mubr.f32.mxu0 0.0
        %1119 = vmatmul.mubr.f32.gmra.mxu0 %v783
        %v1120 = vpop.f32.mrf.mxu0
        %v1121 = vadd.f32 %v512, %v1120
        %v1122 = vpop.f32.mrf.mxu0
        %v1123 = vadd.f32 %v512, %v1122
        %1124 = vmatprep.mubr.f32.mxu0 0.0
        %1125 = vmatmul.mubr.f32.gmra.mxu0 %v786
        %v1126 = vpop.f32.mrf.mxu0
        %v1127 = vadd.f32 %v517, %v1126
        %v1128 = vpop.f32.mrf.mxu0
        %v1129 = vadd.f32 %v517, %v1128
        %1130 = vmatprep.mubr.f32.mxu0 0.0
        %1131 = vmatmul.mubr.f32.gmra.mxu0 %v789
        %v1132 = vpop.f32.mrf.mxu0
        %v1133 = vadd.f32 %v522, %v1132
        %v1134 = vpop.f32.mrf.mxu0
        %v1135 = vadd.f32 %v522, %v1134
        %1136 = vmatprep.mubr.f32.mxu0 0.0
        %1137 = vmatmul.mubr.f32.gmra.mxu0 %v792
        %v1138 = vpop.f32.mrf.mxu0
        %v1139 = vadd.f32 %v527, %v1138
        %v1140 = vpop.f32.mrf.mxu0
        %v1141 = vadd.f32 %v527, %v1140
        %1142 = vmatprep.mubr.f32.mxu0 0.0
        %1143 = vmatmul.mubr.f32.gmra.mxu0 %v795
        %v1144 = vpop.f32.mrf.mxu0
        %v1145 = vadd.f32 %v532, %v1144
        %v1146 = vpop.f32.mrf.mxu0
        %v1147 = vadd.f32 %v532, %v1146
        %1148 = vmatprep.mubr.f32.mxu0 0.0
        %1149 = vmatmul.mubr.f32.gmra.mxu0 %v798
        %v1150 = vpop.f32.mrf.mxu0
        %v1151 = vadd.f32 %v537, %v1150
        %v1152 = vpop.f32.mrf.mxu0
        %v1153 = vadd.f32 %v537, %v1152
        %1154 = vmatprep.mubr.f32.mxu0 0.0
        %1155 = vmatmul.mubr.f32.gmra.mxu0 %v801
        %v1156 = vpop.f32.mrf.mxu0
        %v1157 = vadd.f32 %v542, %v1156
        %v1158 = vpop.f32.mrf.mxu0
        %v1159 = vadd.f32 %v542, %v1158
        %1160 = vmatprep.mubr.f32.mxu0 0.0
        %1161 = vmatmul.mubr.f32.gmra.mxu0 %v804
        %v1162 = vpop.f32.mrf.mxu0
        %v1163 = vadd.f32 %v547, %v1162
        %v1164 = vpop.f32.mrf.mxu0
        %v1165 = vadd.f32 %v547, %v1164
        %1166 = vmatprep.mubr.f32.mxu0 0.0
        %1167 = vmatmul.mubr.f32.gmra.mxu0 %v807
        %v1168 = vpop.f32.mrf.mxu0
        %v1169 = vadd.f32 %v552, %v1168
        %v1170 = vpop.f32.mrf.mxu0
        %v1171 = vadd.f32 %v552, %v1170
        %1172 = vmatprep.mubr.f32.mxu0 0.0
        %1173 = vmatmul.mubr.f32.gmra.mxu0 %v810
        %v1174 = vpop.f32.mrf.mxu0
        %v1175 = vadd.f32 %v557, %v1174
        %v1176 = vpop.f32.mrf.mxu0
        %v1177 = vadd.f32 %v557, %v1176
        %1178 = vmatprep.mubr.f32.mxu0 0.0
        %1179 = vmatmul.mubr.f32.gmra.mxu0 %v813
        %v1180 = vpop.f32.mrf.mxu0
        %v1181 = vadd.f32 %v562, %v1180
        %v1182 = vpop.f32.mrf.mxu0
        %v1183 = vadd.f32 %v562, %v1182
        %1184 = vmatprep.mubr.f32.mxu0 0.0
        %1185 = vmatmul.mubr.f32.gmra.mxu0 %v816
        %v1186 = vpop.f32.mrf.mxu0
        %v1187 = vadd.f32 %v567, %v1186
        %v1188 = vpop.f32.mrf.mxu0
        %v1189 = vadd.f32 %v567, %v1188
        %1190 = vmatprep.mubr.f32.mxu0 0.0
        %1191 = vmatmul.mubr.f32.gmra.mxu0 %v819
        %v1192 = vpop.f32.mrf.mxu0
        %v1193 = vadd.f32 %v572, %v1192
        %v1194 = vpop.f32.mrf.mxu0
        %v1195 = vadd.f32 %v572, %v1194
        %1196 = vmatprep.mubr.f32.mxu0 0.0
        %1197 = vmatmul.mubr.f32.gmra.mxu0 %v822
        %v1198 = vpop.f32.mrf.mxu0
        %v1199 = vadd.f32 %v577, %v1198
        %v1200 = vpop.f32.mrf.mxu0
        %v1201 = vadd.f32 %v577, %v1200
        %1202 = vmatprep.mubr.f32.mxu0 0.0
        %1203 = vmatmul.mubr.f32.gmra.mxu0 %v825
        %v1204 = vpop.f32.mrf.mxu0
        %v1205 = vadd.f32 %v582, %v1204
        %v1206 = vpop.f32.mrf.mxu0
        %v1207 = vadd.f32 %v582, %v1206
        %1208 = vmatprep.mubr.f32.mxu0 0.0
        %1209 = vmatmul.mubr.f32.gmra.mxu0 %v828
        %v1210 = vpop.f32.mrf.mxu0
        %v1211 = vadd.f32 %v587, %v1210
        %v1212 = vpop.f32.mrf.mxu0
        %v1213 = vadd.f32 %v587, %v1212
        %1214 = vmatprep.mubr.f32.mxu0 0.0
        %1215 = vmatmul.mubr.f32.gmra.mxu0 %v831
        %v1216 = vpop.f32.mrf.mxu0
        %v1217 = vadd.f32 %v592, %v1216
        %v1218 = vpop.f32.mrf.mxu0
        %v1219 = vadd.f32 %v592, %v1218
        %1220 = vmatprep.mubr.f32.mxu0 0.0
        %1221 = vmatmul.mubr.f32.gmra.mxu0 %v834
        %v1222 = vpop.f32.mrf.mxu0
        %v1223 = vadd.f32 %v597, %v1222
        %v1224 = vpop.f32.mrf.mxu0
        %v1225 = vadd.f32 %v597, %v1224
        %1226 = vmatprep.mubr.f32.mxu0 0.0
        %1227 = vmatmul.mubr.f32.gmra.mxu0 %v837
        %v1228 = vpop.f32.mrf.mxu0
        %v1229 = vadd.f32 %v602, %v1228
        %v1230 = vpop.f32.mrf.mxu0
        %v1231 = vadd.f32 %v602, %v1230
        %1232 = vmatprep.mubr.f32.mxu0 0.0
        %1233 = vmatmul.mubr.f32.gmra.mxu0 %v840
        %v1234 = vpop.f32.mrf.mxu0
        %v1235 = vadd.f32 %v607, %v1234
        %v1236 = vpop.f32.mrf.mxu0
        %v1237 = vadd.f32 %v607, %v1236
        %1238 = vmatprep.mubr.f32.mxu0 0.0
        %1239 = vmatmul.mubr.f32.gmra.mxu0 %v843
        %v1240 = vpop.f32.mrf.mxu0
        %v1241 = vadd.f32 %v612, %v1240
        %v1242 = vpop.f32.mrf.mxu0
        %v1243 = vadd.f32 %v612, %v1242
        %1244 = vmatprep.mubr.f32.mxu0 0.0
        %1245 = vmatmul.mubr.f32.gmra.mxu0 %v846
        %v1246 = vpop.f32.mrf.mxu0
        %v1247 = vadd.f32 %v617, %v1246
        %v1248 = vpop.f32.mrf.mxu0
        %v1249 = vadd.f32 %v617, %v1248
        %1250 = vmatprep.mubr.f32.mxu0 0.0
        %1251 = vmatmul.mubr.f32.gmra.mxu0 %v849
        %v1252 = vpop.f32.mrf.mxu0
        %v1253 = vadd.f32 %v622, %v1252
        %v1254 = vpop.f32.mrf.mxu0
        %v1255 = vadd.f32 %v622, %v1254
        %1256 = vmatprep.mubr.f32.mxu0 0.0
        %1257 = vmatmul.mubr.f32.gmra.mxu0 %v852
        %v1258 = vpop.f32.mrf.mxu0
        %v1259 = vadd.f32 %v627, %v1258
        %v1260 = vpop.f32.mrf.mxu0
        %v1261 = vadd.f32 %v627, %v1260
        %1262 = vmatprep.mubr.f32.mxu0 0.0
        %1263 = vmatmul.mubr.f32.gmra.mxu0 %v855
        %v1264 = vpop.f32.mrf.mxu0
        %v1265 = vadd.f32 %v632, %v1264
        %v1266 = vpop.f32.mrf.mxu0
        %v1267 = vadd.f32 %v632, %v1266
        %1268 = vmatprep.mubr.f32.mxu0 0.0
        %1269 = vmatmul.mubr.f32.gmra.mxu0 %v858
        %v1270 = vpop.f32.mrf.mxu0
        %v1271 = vadd.f32 %v637, %v1270
        %v1272 = vpop.f32.mrf.mxu0
        %v1273 = vadd.f32 %v637, %v1272
        %1274 = vmatprep.mubr.f32.mxu0 0.0
        %1275 = vmatmul.mubr.f32.gmra.mxu0 %v861
        %v1276 = vpop.f32.mrf.mxu0
        %v1277 = vadd.f32 %v642, %v1276
        %v1278 = vpop.f32.mrf.mxu0
        %v1279 = vadd.f32 %v642, %v1278
        %1280 = vmatprep.mubr.f32.mxu0 0.0
        %1281 = vmatmul.mubr.f32.gmra.mxu0 %v864
        %v1282 = vpop.f32.mrf.mxu0
        %v1283 = vadd.f32 %v647, %v1282
        %v1284 = vpop.f32.mrf.mxu0
        %v1285 = vadd.f32 %v647, %v1284
        %1286 = vmatprep.mubr.f32.mxu0 0.0
        %1287 = vmatmul.mubr.f32.gmra.mxu0 %v867
        %v1288 = vpop.f32.mrf.mxu0
        %v1289 = vadd.f32 %v652, %v1288
        %v1290 = vpop.f32.mrf.mxu0
        %v1291 = vadd.f32 %v652, %v1290
        %1292 = vmatprep.mubr.f32.mxu0 0.0
        %1293 = vmatmul.mubr.f32.gmra.mxu0 %v870
        %v1294 = vpop.f32.mrf.mxu0
        %v1295 = vadd.f32 %v657, %v1294
        %v1296 = vpop.f32.mrf.mxu0
        %v1297 = vadd.f32 %v657, %v1296
        %1298 = vmatprep.mubr.f32.mxu0 0.0
        %1299 = vmatmul.mubr.f32.gmra.mxu0 %v873
        %v1300 = vpop.f32.mrf.mxu0
        %v1301 = vadd.f32 %v662, %v1300
        %v1302 = vpop.f32.mrf.mxu0
        %v1303 = vadd.f32 %v662, %v1302
        %1304 = vmatprep.mubr.f32.mxu0 0.0
        %1305 = vmatmul.mubr.f32.gmra.mxu0 %v876
        %v1306 = vpop.f32.mrf.mxu0
        %v1307 = vadd.f32 %v667, %v1306
        %v1308 = vpop.f32.mrf.mxu0
        %v1309 = vadd.f32 %v667, %v1308
        %1310 = vmatprep.mubr.f32.mxu0 0.0
        %1311 = vmatmul.mubr.f32.gmra.mxu0 %v879
        %v1312 = vpop.f32.mrf.mxu0
        %v1313 = vadd.f32 %v672, %v1312
        %v1314 = vpop.f32.mrf.mxu0
        %v1315 = vadd.f32 %v672, %v1314
        %1316 = vmatprep.mubr.f32.mxu0 0.0
        %1317 = vmatmul.mubr.f32.gmra.mxu0 %v882
        %v1318 = vpop.f32.mrf.mxu0
        %v1319 = vadd.f32 %v677, %v1318
        %v1320 = vpop.f32.mrf.mxu0
        %v1321 = vadd.f32 %v677, %v1320
        %1322 = vmatprep.mubr.f32.mxu0 0.0
        %1323 = vmatmul.mubr.f32.gmra.mxu0 %v885
        %v1324 = vpop.f32.mrf.mxu0
        %v1325 = vadd.f32 %v682, %v1324
        %v1326 = vpop.f32.mrf.mxu0
        %v1327 = vadd.f32 %v682, %v1326
        %1328 = vmatprep.mubr.f32.mxu0 0.0
        %1329 = vmatmul.mubr.f32.gmra.mxu0 %v888
        %v1330 = vpop.f32.mrf.mxu0
        %v1331 = vadd.f32 %v687, %v1330
        %v1332 = vpop.f32.mrf.mxu0
        %v1333 = vadd.f32 %v687, %v1332
        %1334 = vmatprep.mubr.f32.mxu0 0.0
        %1335 = vmatmul.mubr.f32.gmra.mxu0 %v891
        %v1336 = vpop.f32.mrf.mxu0
        %v1337 = vadd.f32 %v692, %v1336
        %v1338 = vpop.f32.mrf.mxu0
        %v1339 = vadd.f32 %v692, %v1338
        %1340 = vmatprep.mubr.f32.mxu0 0.0
        %1341 = vmatmul.mubr.f32.gmra.mxu0 %v894
        %v1342 = vpop.f32.mrf.mxu0
        %v1343 = vadd.f32 %v697, %v1342
        %v1344 = vpop.f32.mrf.mxu0
        %v1345 = vadd.f32 %v697, %v1344
        %1346 = vmatprep.mubr.f32.mxu0 0.0
        %1347 = vmatmul.mubr.f32.gmra.mxu0 %v897
        %v1348 = vpop.f32.mrf.mxu0
        %v1349 = vadd.f32 %v702, %v1348
        %v1350 = vpop.f32.mrf.mxu0
        %v1351 = vadd.f32 %v702, %v1350
        %1352 = vdwg.mxu0
        %v1353 = vmax.f32 %v971, 0.0
        %v1354 = vmax.f32 %v973, 0.0
        %v1355 = vmax.f32 %v977, 0.0
        %v1356 = vmax.f32 %v979, 0.0
        %v1357 = vmax.f32 %v983, 0.0
        %v1358 = vmax.f32 %v985, 0.0
        %v1359 = vmax.f32 %v989, 0.0
        %v1360 = vmax.f32 %v991, 0.0
        %v1361 = vmax.f32 %v995, 0.0
        %v1362 = vmax.f32 %v997, 0.0
        %v1363 = vmax.f32 %v1001, 0.0
        %v1364 = vmax.f32 %v1003, 0.0
        %v1365 = vmax.f32 %v1007, 0.0
        %v1366 = vmax.f32 %v1009, 0.0
        %v1367 = vmax.f32 %v1013, 0.0
        %v1368 = vmax.f32 %v1015, 0.0
        %v1369 = vmax.f32 %v1019, 0.0
        %v1370 = vmax.f32 %v1021, 0.0
        %v1371 = vmax.f32 %v1025, 0.0
        %v1372 = vmax.f32 %v1027, 0.0
        %v1373 = vmax.f32 %v1031, 0.0
        %v1374 = vmax.f32 %v1033, 0.0
        %v1375 = vmax.f32 %v1037, 0.0
        %v1376 = vmax.f32 %v1039, 0.0
        %v1377 = vmax.f32 %v1043, 0.0
        %v1378 = vmax.f32 %v1045, 0.0
        %v1379 = vmax.f32 %v1049, 0.0
        %v1380 = vmax.f32 %v1051, 0.0
        %v1381 = vmax.f32 %v1055, 0.0
        %v1382 = vmax.f32 %v1057, 0.0
        %v1383 = vmax.f32 %v1061, 0.0
        %v1384 = vmax.f32 %v1063, 0.0
        %v1385 = vmax.f32 %v1067, 0.0
        %v1386 = vmax.f32 %v1069, 0.0
        %v1387 = vmax.f32 %v1073, 0.0
        %v1388 = vmax.f32 %v1075, 0.0
        %v1389 = vmax.f32 %v1079, 0.0
        %v1390 = vmax.f32 %v1081, 0.0
        %v1391 = vmax.f32 %v1085, 0.0
        %v1392 = vmax.f32 %v1087, 0.0
        %v1393 = vmax.f32 %v1091, 0.0
        %v1394 = vmax.f32 %v1093, 0.0
        %v1395 = vmax.f32 %v1097, 0.0
        %v1396 = vmax.f32 %v1099, 0.0
        %v1397 = vmax.f32 %v1103, 0.0
        %v1398 = vmax.f32 %v1105, 0.0
        %v1399 = vmax.f32 %v1109, 0.0
        %v1400 = vmax.f32 %v1111, 0.0
        %v1401 = vmax.f32 %v1115, 0.0
        %v1402 = vmax.f32 %v1117, 0.0
        %v1403 = vmax.f32 %v1121, 0.0
        %v1404 = vmax.f32 %v1123, 0.0
        %v1405 = vmax.f32 %v1127, 0.0
        %v1406 = vmax.f32 %v1129, 0.0
        %v1407 = vmax.f32 %v1133, 0.0
        %v1408 = vmax.f32 %v1135, 0.0
        %v1409 = vmax.f32 %v1139, 0.0
        %v1410 = vmax.f32 %v1141, 0.0
        %v1411 = vmax.f32 %v1145, 0.0
        %v1412 = vmax.f32 %v1147, 0.0
        %v1413 = vmax.f32 %v1151, 0.0
        %v1414 = vmax.f32 %v1153, 0.0
        %v1415 = vmax.f32 %v1157, 0.0
        %v1416 = vmax.f32 %v1159, 0.0
        %v1417 = vmax.f32 %v1163, 0.0
        %v1418 = vmax.f32 %v1165, 0.0
        %v1419 = vmax.f32 %v1169, 0.0
        %v1420 = vmax.f32 %v1171, 0.0
        %v1421 = vmax.f32 %v1175, 0.0
        %v1422 = vmax.f32 %v1177, 0.0
        %v1423 = vmax.f32 %v1181, 0.0
        %v1424 = vmax.f32 %v1183, 0.0
        %v1425 = vmax.f32 %v1187, 0.0
        %v1426 = vmax.f32 %v1189, 0.0
        %v1427 = vmax.f32 %v1193, 0.0
        %v1428 = vmax.f32 %v1195, 0.0
        %v1429 = vmax.f32 %v1199, 0.0
        %v1430 = vmax.f32 %v1201, 0.0
        %v1431 = vmax.f32 %v1205, 0.0
        %v1432 = vmax.f32 %v1207, 0.0
        %v1433 = vmax.f32 %v1211, 0.0
        %v1434 = vmax.f32 %v1213, 0.0
        %v1435 = vmax.f32 %v1217, 0.0
        %v1436 = vmax.f32 %v1219, 0.0
        %v1437 = vmax.f32 %v1223, 0.0
        %v1438 = vmax.f32 %v1225, 0.0
        %v1439 = vmax.f32 %v1229, 0.0
        %v1440 = vmax.f32 %v1231, 0.0
        %v1441 = vmax.f32 %v1235, 0.0
        %v1442 = vmax.f32 %v1237, 0.0
        %v1443 = vmax.f32 %v1241, 0.0
        %v1444 = vmax.f32 %v1243, 0.0
        %v1445 = vmax.f32 %v1247, 0.0
        %v1446 = vmax.f32 %v1249, 0.0
        %v1447 = vmax.f32 %v1253, 0.0
        %v1448 = vmax.f32 %v1255, 0.0
        %v1449 = vmax.f32 %v1259, 0.0
        %v1450 = vmax.f32 %v1261, 0.0
        %v1451 = vmax.f32 %v1265, 0.0
        %v1452 = vmax.f32 %v1267, 0.0
        %v1453 = vmax.f32 %v1271, 0.0
        %v1454 = vmax.f32 %v1273, 0.0
        %v1455 = vmax.f32 %v1277, 0.0
        %v1456 = vmax.f32 %v1279, 0.0
        %v1457 = vmax.f32 %v1283, 0.0
        %v1458 = vmax.f32 %v1285, 0.0
        %v1459 = vmax.f32 %v1289, 0.0
        %v1460 = vmax.f32 %v1291, 0.0
        %v1461 = vmax.f32 %v1295, 0.0
        %v1462 = vmax.f32 %v1297, 0.0
        %v1463 = vmax.f32 %v1301, 0.0
        %v1464 = vmax.f32 %v1303, 0.0
        %v1465 = vmax.f32 %v1307, 0.0
        %v1466 = vmax.f32 %v1309, 0.0
        %v1467 = vmax.f32 %v1313, 0.0
        %v1468 = vmax.f32 %v1315, 0.0
        %v1469 = vmax.f32 %v1319, 0.0
        %v1470 = vmax.f32 %v1321, 0.0
        %v1471 = vmax.f32 %v1325, 0.0
        %v1472 = vmax.f32 %v1327, 0.0
        %v1473 = vmax.f32 %v1331, 0.0
        %v1474 = vmax.f32 %v1333, 0.0
        %v1475 = vmax.f32 %v1337, 0.0
        %v1476 = vmax.f32 %v1339, 0.0
        %v1477 = vmax.f32 %v1343, 0.0
        %v1478 = vmax.f32 %v1345, 0.0
        %v1479 = vmax.f32 %v1349, 0.0
        %v1480 = vmax.f32 %v1351, 0.0
        %v1481 = vld [vmem:[%s3] sm:$0xff]
        %v1482 = vld [vmem:[%s3 + $0x8] sm:$0xff]
        %v1483 = vld [vmem:[%s3 + $0x10] sm:$0xff]
        %v1484 = vld [vmem:[%s3 + $0x18] sm:$0xff]
        %1485 = vmatprep.subr.mxu0 %v1384
        %1486 = vmatpush1.msra.mxu0 %v1383
        %1487 = vmatprep.subr.mxu0 %v1382
        %1488 = vmatpush1.msra.mxu0 %v1381
        %1489 = vmatprep.subr.mxu0 %v1380
        %1490 = vmatpush1.msra.mxu0 %v1379
        %1491 = vmatprep.subr.mxu0 %v1378
        %1492 = vmatpush1.msra.mxu0 %v1377
        %1493 = vmatprep.subr.mxu0 %v1376
        %1494 = vmatpush1.msra.mxu0 %v1375
        %1495 = vmatprep.subr.mxu0 %v1374
        %1496 = vmatpush1.msra.mxu0 %v1373
        %1497 = vmatprep.subr.mxu0 %v1372
        %1498 = vmatpush1.msra.mxu0 %v1371
        %1499 = vmatprep.subr.mxu0 %v1370
        %1500 = vmatpush1.msra.mxu0 %v1369
        %1501 = vmatprep.subr.mxu0 %v1368
        %1502 = vmatpush1.msra.mxu0 %v1367
        %1503 = vmatprep.subr.mxu0 %v1366
        %1504 = vmatpush1.msra.mxu0 %v1365
        %1505 = vmatprep.subr.mxu0 %v1364
        %1506 = vmatpush1.msra.mxu0 %v1363
        %1507 = vmatprep.subr.mxu0 %v1362
        %1508 = vmatpush1.msra.mxu0 %v1361
        %1509 = vmatprep.subr.mxu0 %v1360
        %1510 = vmatpush1.msra.mxu0 %v1359
        %1511 = vmatprep.subr.mxu0 %v1358
        %1512 = vmatpush1.msra.mxu0 %v1357
        %1513 = vmatprep.subr.mxu0 %v1356
        %1514 = vmatpush1.msra.mxu0 %v1355
        %1515 = vmatprep.subr.mxu0 %v1354
        %1516 = vmatpush1.msra.mxu0 %v1353
        %1517 = vmatprep.subr.mxu0 %v1416
        %1518 = vmatpush2.msra.mxu0 %v1415
        %1519 = vmatprep.subr.mxu0 %v1414
        %1520 = vmatpush2.msra.mxu0 %v1413
        %1521 = vmatprep.subr.mxu0 %v1412
        %1522 = vmatpush2.msra.mxu0 %v1411
        %1523 = vmatprep.subr.mxu0 %v1410
        %1524 = vmatpush2.msra.mxu0 %v1409
        %1525 = vmatprep.subr.mxu0 %v1408
        %1526 = vmatpush2.msra.mxu0 %v1407
        %1527 = vmatprep.subr.mxu0 %v1406
        %1528 = vmatpush2.msra.mxu0 %v1405
        %1529 = vmatprep.subr.mxu0 %v1404
        %1530 = vmatpush2.msra.mxu0 %v1403
        %1531 = vmatprep.subr.mxu0 %v1402
        %1532 = vmatpush2.msra.mxu0 %v1401
        %1533 = vmatprep.subr.mxu0 %v1400
        %1534 = vmatpush2.msra.mxu0 %v1399
        %1535 = vmatprep.subr.mxu0 %v1398
        %1536 = vmatpush2.msra.mxu0 %v1397
        %1537 = vmatprep.subr.mxu0 %v1396
        %1538 = vmatpush2.msra.mxu0 %v1395
        %1539 = vmatprep.subr.mxu0 %v1394
        %1540 = vmatpush2.msra.mxu0 %v1393
        %1541 = vmatprep.subr.mxu0 %v1392
        %1542 = vmatpush2.msra.mxu0 %v1391
        %1543 = vmatprep.subr.mxu0 %v1390
        %1544 = vmatpush2.msra.mxu0 %v1389
        %1545 = vmatprep.subr.mxu0 %v1388
        %1546 = vmatpush2.msra.mxu0 %v1387
        %1547 = vmatprep.subr.mxu0 %v1386
        %1548 = vmatpush2.msra.mxu0 %v1385
        %1549 = vmatprep.mubr.f32.mxu0 %v1482
        %1550 = vmatmul.mubr.f32.gmra.mxu0 %v1481
        %v1551 = vpop.f32.mrf.mxu0
        %v1552 = vadd.f32 0.0, %v1551
        %v1553 = vpop.f32.mrf.mxu0
        %v1554 = vadd.f32 0.0, %v1553
        %1555 = vdwg.mxu0
        %1556 = vmatprep.subr.mxu0 %v1448
        %1557 = vmatpush1.msra.mxu0 %v1447
        %1558 = vmatprep.subr.mxu0 %v1446
        %1559 = vmatpush1.msra.mxu0 %v1445
        %1560 = vmatprep.subr.mxu0 %v1444
        %1561 = vmatpush1.msra.mxu0 %v1443
        %1562 = vmatprep.subr.mxu0 %v1442
        %1563 = vmatpush1.msra.mxu0 %v1441
        %1564 = vmatprep.subr.mxu0 %v1440
        %1565 = vmatpush1.msra.mxu0 %v1439
        %1566 = vmatprep.subr.mxu0 %v1438
        %1567 = vmatpush1.msra.mxu0 %v1437
        %1568 = vmatprep.subr.mxu0 %v1436
        %1569 = vmatpush1.msra.mxu0 %v1435
        %1570 = vmatprep.subr.mxu0 %v1434
        %1571 = vmatpush1.msra.mxu0 %v1433
        %1572 = vmatprep.subr.mxu0 %v1432
        %1573 = vmatpush1.msra.mxu0 %v1431
        %1574 = vmatprep.subr.mxu0 %v1430
        %1575 = vmatpush1.msra.mxu0 %v1429
        %1576 = vmatprep.subr.mxu0 %v1428
        %1577 = vmatpush1.msra.mxu0 %v1427
        %1578 = vmatprep.subr.mxu0 %v1426
        %1579 = vmatpush1.msra.mxu0 %v1425
        %1580 = vmatprep.subr.mxu0 %v1424
        %1581 = vmatpush1.msra.mxu0 %v1423
        %1582 = vmatprep.subr.mxu0 %v1422
        %1583 = vmatpush1.msra.mxu0 %v1421
        %1584 = vmatprep.subr.mxu0 %v1420
        %1585 = vmatpush1.msra.mxu0 %v1419
        %1586 = vmatprep.subr.mxu0 %v1418
        %1587 = vmatpush1.msra.mxu0 %v1417
        %1588 = vmatprep.subr.mxu0 %v1480
        %1589 = vmatpush2.msra.mxu0 %v1479
        %1590 = vmatprep.subr.mxu0 %v1478
        %1591 = vmatpush2.msra.mxu0 %v1477
        %1592 = vmatprep.subr.mxu0 %v1476
        %1593 = vmatpush2.msra.mxu0 %v1475
        %1594 = vmatprep.subr.mxu0 %v1474
        %1595 = vmatpush2.msra.mxu0 %v1473
        %1596 = vmatprep.subr.mxu0 %v1472
        %1597 = vmatpush2.msra.mxu0 %v1471
        %1598 = vmatprep.subr.mxu0 %v1470
        %1599 = vmatpush2.msra.mxu0 %v1469
        %1600 = vmatprep.subr.mxu0 %v1468
        %1601 = vmatpush2.msra.mxu0 %v1467
        %1602 = vmatprep.subr.mxu0 %v1466
        %1603 = vmatpush2.msra.mxu0 %v1465
        %1604 = vmatprep.subr.mxu0 %v1464
        %1605 = vmatpush2.msra.mxu0 %v1463
        %1606 = vmatprep.subr.mxu0 %v1462
        %1607 = vmatpush2.msra.mxu0 %v1461
        %1608 = vmatprep.subr.mxu0 %v1460
        %1609 = vmatpush2.msra.mxu0 %v1459
        %1610 = vmatprep.subr.mxu0 %v1458
        %1611 = vmatpush2.msra.mxu0 %v1457
        %1612 = vmatprep.subr.mxu0 %v1456
        %1613 = vmatpush2.msra.mxu0 %v1455
        %1614 = vmatprep.subr.mxu0 %v1454
        %1615 = vmatpush2.msra.mxu0 %v1453
        %1616 = vmatprep.subr.mxu0 %v1452
        %1617 = vmatpush2.msra.mxu0 %v1451
        %1618 = vmatprep.subr.mxu0 %v1450
        %1619 = vmatpush2.msra.mxu0 %v1449
        %1620 = vmatprep.mubr.f32.mxu0 %v1484
        %1621 = vmatmul.mubr.f32.gmra.mxu0 %v1483
        %v1622 = vpop.f32.mrf.mxu0
        %v1623 = vadd.f32 %v1552, %v1622
        %v1624 = vpop.f32.mrf.mxu0
        %v1625 = vadd.f32 %v1554, %v1624
        %1626 = vdwg.mxu0
        %s1627 = sld [smem:[#allocation2]]
        %v1628 = vstv %s1627
        %v1629 = vadd.f32 %v1623, %v1628
        %v1630 = vadd.f32 %v1625, %v1628
        %v1631 = vmin.f32 %v1629, 20.0
        %v1632 = vmin.f32 %v1630, 20.0
        %vm1633 = vcmp.gt.f32.partialorder %v1629, 20.0
        %vm1634 = vcmp.gt.f32.partialorder %v1630, 20.0
        %v1635 = vmul.f32 %v1631, 1.442695
        %v1636 = vpow.pop %v1635
        %v1637 = vmul.f32 %v1632, 1.442695
        %v1638 = vpow.pop %v1637
        %v1639 = vadd.f32 %v1636, 1.0
        %v1640 = vlog2.pop %v1639
        %v1641 = vmul.f32 %v1640, 0.6931472
        %v1642 = vmul.f32 -0.5, %v1636
        %v1643 = vadd.f32 %v1642, 1.0
        %v1644 = vmul.f32 %v1643, %v1636
        %v1645 = vand.u32 2147483647, %v1636
        %vm1646 = vcmp.lt.f32.partialorder %v1645, 0.0004427343
        %v1647 = vsel %vm1646, %v1644, %v1641
        %v1648 = vadd.f32 %v1638, 1.0
        %v1649 = vlog2.pop %v1648
        %v1650 = vmul.f32 %v1649, 0.6931472
        %v1651 = vmul.f32 -0.5, %v1638
        %v1652 = vadd.f32 %v1651, 1.0
        %v1653 = vmul.f32 %v1652, %v1638
        %v1654 = vand.u32 2147483647, %v1638
        %vm1655 = vcmp.lt.f32.partialorder %v1654, 0.0004427343
        %v1656 = vsel %vm1655, %v1653, %v1650
        %v1657 = vsel %vm1633, %v1629, %v1647
        %v1658 = vsel %vm1634, %v1630, %v1656
        %v1661 = vcombine.low %v1657, %v1658
        %v1663 = vunpack.c.l.s4 1966171168
        %v1664 = vunpack.c.0.s8 %v1663
        %v1665 = vlaneseq
        %v1666 = vshrl.u32 %v1665, 7
        %v1667 = vsub.s32 %v1664, %v1666
        %v1668 = vrot.slane %v1661, %v1667
        %v1670 = vunpack.c.l.s4 1966171168
        %v1671 = vunpack.c.0.s8 %v1670
        %v1672 = vlaneseq
        %v1673 = vshrl.u32 %v1672, 7
        %v1674 = vsub.s32 %v1671, %v1673
        %v1675 = vrot.slane %v1668, %v1674
        %v1677 = vlaneseq
        %vm1678 = vcmp.ge.s32.totalorder %v1677, 0
        %vm1679 = vcmp.lt.s32.totalorder %v1677, 256
        %vm1680 = vmand %vm1678, %vm1679
        %1681 = vst.msk [vmem:[%s243] sm:$0x3] %vm1680, %v1675
        %s1682 = sand.u32 %s154, 1
        %s1683 = scalar_lea.sflag [#allocation4], %s1682
        %s1684 = sand.u32 %s154, 1
        %s1685 = smul.addr %s1684, 2
        %s1686 = scalar_lea.vmem [#allocation3], %s1685
        // Predicated region
        $region41: #{tpu_custom_call.1} parent=39 // pred_check
          %p1687 = pneg %p164
        $region42: #{tpu_custom_call.1} parent=39 // pred_check_branch
          %1689 = sbr.rel (%p1687) target = $region44
        $region43: #{tpu_custom_call.1} parent=39 // pred_region
          %s1690 = smul.u32 2, %s25
          %s1692 = ssub.s32 32, 32
          %1693 = vsyncadd %s1683, %s1692
          %s1694 = smul.addr %s24, 2
          %s1695 = sadd.s32 %s1690, %s1694
          %s1696 = smul.addr %s1695, 16
          %s1697 = scalar_lea.hbm %s5, %s1696
          %s1699 = sshll.u32 %s1686, 4
          %s1700 = int_to_ptr.vmem [resolvable:$true] %s1699
          %1702 = dma.vmem_to_hbm [thread:$0]  %s1700, 32, %s1697, %s1683
        $region44: #{tpu_custom_call.1} parent=39 // pred_fallthru
          _
      $region40: #{tpu_custom_call.1} parent=5 // pred_fallthru
        _
      %p1703 = scmp.le.s32.totalorder 2, %s15
      // Predicated region
      $region45: #{tpu_custom_call.1} parent=5 // pred_check
        %p1704 = pneg %p1703
      $region46: #{tpu_custom_call.1} parent=5 // pred_check_branch
        %1706 = sbr.rel (%p1704) target = $region48
      $region47: #{tpu_custom_call.1} parent=5 // pred_region
        %s1707 = ssub.s32 %s15, 2
        // Predicated region
        $region49: #{tpu_custom_call.1} parent=47 // pred_check
          %p1708 = pneg %p170
        $region50: #{tpu_custom_call.1} parent=47 // pred_check_branch
          %1710 = sbr.rel (%p1708) target = $region52
        $region51: #{tpu_custom_call.1} parent=47 // pred_region
          %s1711 = sand.u32 %s155, 1
          %s1712 = scalar_lea.sflag [#allocation4], %s1711
          %s1713 = sand.u32 %s155, 1
          %s1714 = smul.addr %s1713, 2
          %s1715 = scalar_lea.vmem [#allocation3], %s1714
          %1716 = dma.done %s1712, 32
        $region52: #{tpu_custom_call.1} parent=47 // pred_fallthru
          _
      $region48: #{tpu_custom_call.1} parent=5 // pred_fallthru
        _
    $region6: #{tpu_custom_call.1} parent=1 // loop_footer
      %s19 = sadd.s32 1, %s15
    $region7: #{tpu_custom_call.1} parent=1 // loop_footer_branch
      %14 = sbr.rel target = $region3
    $region8: #{tpu_custom_call.1} parent=1 // loop_exit
      _
    %1717 = vsyncpa [#allocation4], 1
    %s1718 = scalar_lea.sflag [#allocation4], 1
    %1719 = vsyncpa %s1718, 1

</llo_original>
